<compile_context>
chip_gen: v7x
topology: tpu7x:2x2x1
jax: 0.10.0
libtpu: 0.0.40
codegen_flags: <defaults>
</compile_context>

<pallas_src>
import jax
import jax.numpy as jnp
from jax import lax
from jax.experimental import pallas as pl
from jax.experimental.pallas import tpu as pltpu


# ----------------------------------------------------------------------------
# elementwise helpers (used both inside the Pallas kernel and in the reference)
# ----------------------------------------------------------------------------
_ERF_ALPHA = (-2.72614225801306e-10, 2.77068142495902e-08, -2.10102402082508e-06,
              -5.69250639462346e-05, -7.34990630326855e-04, -2.95459980854025e-03,
              -1.60960333262415e-02)
_ERF_BETA = (-1.45660718464996e-05, -2.13374055278905e-04, -1.68282697438203e-03,
             -7.37332916720468e-03, -1.42647390514189e-02)


def _erf(x):
    # float32 rational approximation of erf (same form XLA uses); pure VPU+EUP ops.
    x = jnp.clip(x, -4.0, 4.0)
    x2 = x * x
    p = jnp.full_like(x, _ERF_ALPHA[0])
    for c in _ERF_ALPHA[1:]:
        p = p * x2 + c
    p = p * x
    q = jnp.full_like(x, _ERF_BETA[0])
    for c in _ERF_BETA[1:]:
        q = q * x2 + c
    return jnp.clip(p / q, -1.0, 1.0)


def _gelu(x):
    # exact (erf-based) GELU, matching PyTorch F.gelu default
    return 0.5 * x * (1.0 + _erf(x * 0.7071067811865476))


def _gn_cm(x, c_real, gamma, beta, eps=1e-5):
    """GroupNorm(1, C) on a channel-major (C_pad, HW) tile.

    Statistics are computed over the first `c_real` (real) channels only;
    padded rows are normalised with the same stats (their values are killed
    downstream by zero weight rows anyway)."""
    xs = x[:c_real] if c_real < x.shape[0] else x
    mu = jnp.mean(jnp.mean(xs, axis=1, keepdims=True), axis=0, keepdims=True)
    ds = xs - mu
    var = jnp.mean(jnp.mean(ds * ds, axis=1, keepdims=True), axis=0, keepdims=True)
    return (x - mu) * lax.rsqrt(var + eps) * gamma + beta


def _ceil8(c):
    return ((c + 7) // 8) * 8


# ----------------------------------------------------------------------------
# the Up kernel (one sample per grid step), channel-major im2col formulation
# ----------------------------------------------------------------------------
def _make_kernel(H, W, cin, cmid, cout):
    HW = H * W
    # lane-aligned left/right zero padding; must cover flat shifts up to W+1
    P = ((W + 2 + 127) // 128) * 128

    def conv(x_cm, w_ref, mask_m1, mask_p1):
        """3x3 'same' conv, no bias.  x_cm: (Cin_p, HW); w_ref: (Cout_p, 9*Cin_p)."""
        c = x_cm.shape[0]
        z = jnp.zeros((c, P), jnp.float32)
        xp = jnp.concatenate([z, x_cm, z], axis=1)          # (c, HW + 2P), lane-aligned
        pieces = []
        for dy in (-1, 0, 1):
            for dx in (-1, 0, 1):
                k = dy * W + dx
                piece = xp[:, P + k:P + k + HW]             # static lane slice
                if dx == -1:
                    piece = jnp.where(mask_m1, piece, 0.0)
                elif dx == 1:
                    piece = jnp.where(mask_p1, piece, 0.0)
                pieces.append(piece)
        patch = jnp.concatenate(pieces, axis=0)             # (9*c, HW), sublane-aligned
        # single MXU matmul: (Cout_p, 9*Cin_p) @ (9*Cin_p, HW)
        return jnp.dot(w_ref[...], patch, preferred_element_type=jnp.float32)

    def kernel(x_ref, e_ref,
               w1, g1, b1, w2, g2, b2, w3, g3, b3, w4, g4, b4,
               o_ref):
        x = x_ref[0].astype(jnp.float32)                    # (cin_p, HW)

        # hoisted column iota + horizontal-boundary masks (shared by all 4 convs)
        col = lax.broadcasted_iota(jnp.int32, (1, HW), 1) % W
        mask_m1 = col >= 1            # tap dx = -1 valid
        mask_p1 = col < (W - 1)       # tap dx = +1 valid

        # DoubleConv #1 (residual=True): gelu(x + dc(x))
        h = conv(x, w1, mask_m1, mask_p1)
        h = _gelu(_gn_cm(h, cin, g1[...], b1[...]))
        h = conv(h, w2, mask_m1, mask_p1)
        h = _gn_cm(h, cin, g2[...], b2[...])
        y = _gelu(x + h)

        # DoubleConv #2: cin -> cmid -> cout (no residual)
        h = conv(y, w3, mask_m1, mask_p1)
        h = _gelu(_gn_cm(h, cmid, g3[...], b3[...]))
        h = conv(h, w4, mask_m1, mask_p1)
        h = _gn_cm(h, cout, g4[...], b4[...])

        # add the precomputed time embedding (cout, 1) and store lane-dense
        o_ref[0] = (h[:cout] + e_ref[0]).astype(o_ref.dtype)

    return kernel


# ----------------------------------------------------------------------------
# plain-JAX glue
# ----------------------------------------------------------------------------
def upsample_bilinear_x2_align_corners(x):
    """Bilinear upsample, scale_factor=2, align_corners=True. x: NCHW f32."""
    _, _, H, W = x.shape
    Ho, Wo = 2 * H, 2 * W

    def coords(n_in, n_out):
        c = jnp.arange(n_out, dtype=jnp.float32) * (n_in - 1) / (n_out - 1)
        lo = jnp.floor(c).astype(jnp.int32)
        hi = jnp.minimum(lo + 1, n_in - 1)
        return lo, hi, c - lo.astype(jnp.float32)

    lo_h, hi_h, fh = coords(H, Ho)
    lo_w, hi_w, fw = coords(W, Wo)
    xh = (x[:, :, lo_h, :] * (1.0 - fh)[None, None, :, None]
          + x[:, :, hi_h, :] * fh[None, None, :, None])
    return xh[:, :, :, lo_w] * (1.0 - fw) + xh[:, :, :, hi_w] * fw


def _prep_conv_w(w9, ci, co, ci_p, co_p):
    """(9, ci, co) conv weight -> (co_p, 9*ci_p) matmul weight, zero padded."""
    wp = jnp.zeros((9, ci_p, co_p), jnp.float32)
    wp = wp.at[:, :ci, :co].set(w9.astype(jnp.float32))
    return jnp.transpose(wp.reshape(9 * ci_p, co_p))


def _prep_affine(v, c, c_p, fill):
    """(1, c) GroupNorm affine param -> (c_p, 1), padded with `fill`."""
    out = jnp.full((c_p, 1), fill, jnp.float32)
    return out.at[:c, 0].set(v.reshape(-1).astype(jnp.float32))


def up_forward(x, skip_x, t, params):
    """x: (N, Cx, H, W), skip_x: (N, Cs, 2H, 2W), t: (N, emb_dim). Returns NCHW."""
    xu = upsample_bilinear_x2_align_corners(x)
    xc = jnp.concatenate([skip_x, xu], axis=1)              # (N, Cin, Ho, Wo)
    N, cin, Ho, Wo = xc.shape
    HW = Ho * Wo

    cmid = params['w3'].shape[2]
    cout = params['w4'].shape[2]
    cin_p, cmid_p, cout_p = _ceil8(cin), _ceil8(cmid), _ceil8(cout)

    # channel-major, lane-dense input: NCHW -> (N, Cin_p, HW)   (no transposes!)
    x_cm = xc.reshape(N, cin, HW).astype(jnp.float32)
    if cin_p != cin:
        x_cm = jnp.concatenate(
            [x_cm, jnp.zeros((N, cin_p - cin, HW), jnp.float32)], axis=1)

    # time embedding (SiLU + Linear) hoisted out of the kernel
    tf = t.astype(jnp.float32)
    emb = (tf * jax.nn.sigmoid(tf)) @ params['wl'] + params['bl']   # (N, cout)
    emb = emb.reshape(N, cout, 1)

    weight_args = [
        _prep_conv_w(params['w1'], cin, cin, cin_p, cin_p),
        _prep_affine(params['g1'], cin, cin_p, 1.0),
        _prep_affine(params['b1'], cin, cin_p, 0.0),
        _prep_conv_w(params['w2'], cin, cin, cin_p, cin_p),
        _prep_affine(params['g2'], cin, cin_p, 1.0),
        _prep_affine(params['b2'], cin, cin_p, 0.0),
        _prep_conv_w(params['w3'], cin, cmid, cin_p, cmid_p),
        _prep_affine(params['g3'], cmid, cmid_p, 1.0),
        _prep_affine(params['b3'], cmid, cmid_p, 0.0),
        _prep_conv_w(params['w4'], cmid, cout, cmid_p, cout_p),
        _prep_affine(params['g4'], cout, cout_p, 1.0),
        _prep_affine(params['b4'], cout, cout_p, 0.0),
    ]

    kernel = _make_kernel(Ho, Wo, cin, cmid, cout)

    def full_spec(a):
        nd = a.ndim
        return pl.BlockSpec(a.shape, lambda b, _nd=nd: (0,) * _nd)

    in_specs = ([pl.BlockSpec((1, cin_p, HW), lambda b: (b, 0, 0)),
                 pl.BlockSpec((1, cout, 1), lambda b: (b, 0, 0))]
                + [full_spec(a) for a in weight_args])

    out = pl.pallas_call(
        kernel,
        out_shape=jax.ShapeDtypeStruct((N, cout, HW), jnp.float32),
        grid_spec=pltpu.PrefetchScalarGridSpec(
            num_scalar_prefetch=0,
            grid=(N,),
            in_specs=in_specs,
            out_specs=pl.BlockSpec((1, cout, HW), lambda b: (b, 0, 0)),
        ),
        compiler_params=pltpu.CompilerParams(
            dimension_semantics=("parallel",)),
    )(x_cm, emb, *weight_args)

    # (N, cout, HW) is already channel-major -> NCHW is a pure reshape
    return out.reshape(N, cout, Ho, Wo)


# ----------------------------------------------------------------------------
# deterministic parameter init (shapes follow the PyTorch module's __init__)
# ----------------------------------------------------------------------------
def init_params(key, cin, cout, emb_dim):
    cmid = cin // 2
    ks = jax.random.split(key, 12)

    def conv_w(k, ci, co):  # stored as (9, Cin, Cout) == (ky*3+kx, Cin, Cout)
        return 0.2 * jax.random.normal(k, (9, ci, co), jnp.float32)

    return dict(
        w1=conv_w(ks[0], cin, cin),
        g1=1.0 + 0.1 * jax.random.normal(ks[1], (1, cin), jnp.float32),
        b1=0.1 * jax.random.normal(ks[2], (1, cin), jnp.float32),
        w2=conv_w(ks[3], cin, cin),
        g2=1.0 + 0.1 * jax.random.normal(ks[4], (1, cin), jnp.float32),
        b2=0.1 * jax.random.normal(ks[5], (1, cin), jnp.float32),
        w3=conv_w(ks[6], cin, cmid),
        g3=1.0 + 0.1 * jax.random.normal(ks[7], (1, cmid), jnp.float32),
        b3=0.1 * jax.random.normal(ks[8], (1, cmid), jnp.float32),
        w4=conv_w(ks[9], cmid, cout),
        g4=jnp.ones((1, cout), jnp.float32),
        b4=jnp.zeros((1, cout), jnp.float32),
        wl=0.2 * jax.random.normal(ks[10], (emb_dim, cout), jnp.float32),
        bl=0.1 * jax.random.normal(ks[11], (1, cout), jnp.float32),
    )


# ----------------------------------------------------------------------------
# pure-JAX reference (for a correctness check against the Pallas kernel)
# ----------------------------------------------------------------------------
def _conv3x3_ref(x_nhwc, w9):
    ci, co = w9.shape[1], w9.shape[2]
    w = w9.reshape(3, 3, ci, co)
    return lax.conv_general_dilated(x_nhwc, w, (1, 1), 'SAME',
                                    dimension_numbers=('NHWC', 'HWIO', 'NHWC'))


def _gn_ref(x_nhwc, g, b, eps=1e-5):
    mu = jnp.mean(x_nhwc, axis=(1, 2, 3), keepdims=True)
    var = jnp.mean(jnp.square(x_nhwc - mu), axis=(1, 2, 3), keepdims=True)
    return ((x_nhwc - mu) * lax.rsqrt(var + eps)
            * g.reshape(1, 1, 1, -1) + b.reshape(1, 1, 1, -1))


def up_forward_ref(x, skip_x, t, p):
    xu = upsample_bilinear_x2_align_corners(x)
    xc = jnp.concatenate([skip_x, xu], axis=1)
    xh = jnp.transpose(xc, (0, 2, 3, 1))
    h = _conv3x3_ref(xh, p['w1']); h = _gelu(_gn_ref(h, p['g1'], p['b1']))
    h = _conv3x3_ref(h, p['w2']); h = _gn_ref(h, p['g2'], p['b2'])
    y = _gelu(xh + h)
    h = _conv3x3_ref(y, p['w3']); h = _gelu(_gn_ref(h, p['g3'], p['b3']))
    h = _conv3x3_ref(h, p['w4']); h = _gn_ref(h, p['g4'], p['b4'])
    ts = t * jax.nn.sigmoid(t)
    emb = ts @ p['wl'] + p['bl']
    out = h + emb[:, None, None, :]
    return jnp.transpose(out, (0, 3, 1, 2))


if __name__ == "__main__":
    key = jax.random.PRNGKey(0)
    kx, ks, kt, kp = jax.random.split(key, 4)

    N, Cx, Hs, Ws = 2, 4, 8, 8          # x is the low-res feature map
    Cs = 4                               # skip connection channels
    cin = Cx + Cs                        # in_channels of Up = 8
    cout = 8                             # out_channels of Up
    emb_dim = 32

    x = jax.random.normal(kx, (N, Cx, Hs, Ws), jnp.float32)
    skip = jax.random.normal(ks, (N, Cs, 2 * Hs, 2 * Ws), jnp.float32)
    t = jax.random.normal(kt, (N, emb_dim), jnp.float32)
    params = init_params(kp, cin, cout, emb_dim)

    out = jax.block_until_ready(up_forward(x, skip, t, params))
    ref = jax.block_until_ready(up_forward_ref(x, skip, t, params))

    assert out.shape == (N, cout, 2 * Hs, 2 * Ws), out.shape
    err = float(jnp.max(jnp.abs(out - ref)))
    assert err < 2e-2, f"max abs err {err}"
    print("KERNEL_OK")
</pallas_src>

<mosaic_0001>
module attributes {stable_mosaic.version = 11 : i64} {
  func.func @kernel(%arg0: i32, %arg1: memref<1x8x256xf32, #tpu.memory_space<vmem>>, %arg2: memref<1x8x1xf32, #tpu.memory_space<vmem>>, %arg3: memref<8x72xf32, #tpu.memory_space<vmem>>, %arg4: memref<8x1xf32, #tpu.memory_space<vmem>>, %arg5: memref<8x1xf32, #tpu.memory_space<vmem>>, %arg6: memref<8x72xf32, #tpu.memory_space<vmem>>, %arg7: memref<8x1xf32, #tpu.memory_space<vmem>>, %arg8: memref<8x1xf32, #tpu.memory_space<vmem>>, %arg9: memref<8x72xf32, #tpu.memory_space<vmem>>, %arg10: memref<8x1xf32, #tpu.memory_space<vmem>>, %arg11: memref<8x1xf32, #tpu.memory_space<vmem>>, %arg12: memref<8x72xf32, #tpu.memory_space<vmem>>, %arg13: memref<8x1xf32, #tpu.memory_space<vmem>>, %arg14: memref<8x1xf32, #tpu.memory_space<vmem>>, %arg15: memref<1x8x256xf32, #tpu.memory_space<vmem>>) attributes {dimension_semantics = [#tpu.dimension_semantics<parallel>], iteration_bounds = array<i64: 2>, scalar_prefetch = 0 : i64, scratch_operands = 0 : i64, tpu.core_type = #tpu.core_type<tc>, window_params = [{transform_indices = @transform_0, window_bounds = array<i64: 1, 8, 256>}, {transform_indices = @transform_1, window_bounds = array<i64: 1, 8, 1>}, {pipeline_mode = #tpu.pipeline_mode<synchronous>, transform_indices = @transform_2, window_bounds = array<i64: 8, 72>}, {pipeline_mode = #tpu.pipeline_mode<synchronous>, transform_indices = @transform_3, window_bounds = array<i64: 8, 1>}, {pipeline_mode = #tpu.pipeline_mode<synchronous>, transform_indices = @transform_4, window_bounds = array<i64: 8, 1>}, {pipeline_mode = #tpu.pipeline_mode<synchronous>, transform_indices = @transform_5, window_bounds = array<i64: 8, 72>}, {pipeline_mode = #tpu.pipeline_mode<synchronous>, transform_indices = @transform_6, window_bounds = array<i64: 8, 1>}, {pipeline_mode = #tpu.pipeline_mode<synchronous>, transform_indices = @transform_7, window_bounds = array<i64: 8, 1>}, {pipeline_mode = #tpu.pipeline_mode<synchronous>, transform_indices = @transform_8, window_bounds = array<i64: 8, 72>}, {pipeline_mode = #tpu.pipeline_mode<synchronous>, transform_indices = @transform_9, window_bounds = array<i64: 8, 1>}, {pipeline_mode = #tpu.pipeline_mode<synchronous>, transform_indices = @transform_10, window_bounds = array<i64: 8, 1>}, {pipeline_mode = #tpu.pipeline_mode<synchronous>, transform_indices = @transform_11, window_bounds = array<i64: 8, 72>}, {pipeline_mode = #tpu.pipeline_mode<synchronous>, transform_indices = @transform_12, window_bounds = array<i64: 8, 1>}, {pipeline_mode = #tpu.pipeline_mode<synchronous>, transform_indices = @transform_13, window_bounds = array<i64: 8, 1>}, {transform_indices = @transform_14, window_bounds = array<i64: 1, 8, 256>}]} {
    %c0 = arith.constant 0 : index
    %c0_0 = arith.constant 0 : index
    %c0_1 = arith.constant 0 : index
    %0 = vector.load %arg1[%c0, %c0_0, %c0_1] : memref<1x8x256xf32, #tpu.memory_space<vmem>>, vector<1x8x256xf32>
    %1 = vector.shape_cast %0 : vector<1x8x256xf32> to vector<8x256xf32>
    %2 = tpu.iota {dimensions = array<i32: 1>} : vector<1x256xi32>
    %c16_i32 = arith.constant 16 : i32
    %c0_i32 = arith.constant 0 : i32
    %3 = arith.cmpi eq, %c16_i32, %c0_i32 : i32
    %c1_i32 = arith.constant 1 : i32
    %4 = arith.select %3, %c1_i32, %c16_i32 : i32
    %5 = vector.broadcast %4 : i32 to vector<1x256xi32>
    %6 = arith.remsi %2, %5 : vector<1x256xi32>
    %c0_i32_2 = arith.constant 0 : i32
    %7 = vector.broadcast %c0_i32_2 : i32 to vector<1x256xi32>
    %8 = arith.cmpi ne, %6, %7 : vector<1x256xi32>
    %c0_i32_3 = arith.constant 0 : i32
    %9 = vector.broadcast %c0_i32_3 : i32 to vector<1x256xi32>
    %10 = arith.cmpi slt, %6, %9 : vector<1x256xi32>
    %c0_i32_4 = arith.constant 0 : i32
    %11 = arith.cmpi slt, %4, %c0_i32_4 : i32
    %12 = vector.broadcast %11 : i1 to vector<1x256xi1>
    %13 = vector.broadcast %12 : vector<1x256xi1> to vector<1x256xi1>
    %14 = arith.xori %10, %13 : vector<1x256xi1>
    %15 = arith.andi %14, %8 : vector<1x256xi1>
    %16 = vector.broadcast %4 : i32 to vector<1x256xi32>
    %17 = arith.addi %6, %16 : vector<1x256xi32>
    %18 = arith.select %15, %17, %6 : vector<1x256xi1>, vector<1x256xi32>
    %c1_i32_5 = arith.constant 1 : i32
    %19 = vector.broadcast %c1_i32_5 : i32 to vector<1x256xi32>
    %20 = arith.cmpi sge, %18, %19 : vector<1x256xi32>
    %c15_i32 = arith.constant 15 : i32
    %21 = vector.broadcast %c15_i32 : i32 to vector<1x256xi32>
    %22 = arith.cmpi slt, %18, %21 : vector<1x256xi32>
    %cst = arith.constant 0.000000e+00 : f32
    %23 = vector.broadcast %cst : f32 to vector<8x128xf32>
    %24 = tpu.concatenate %23, %1, %23 in 1 : vector<8x128xf32>, vector<8x256xf32>, vector<8x128xf32> -> vector<8x512xf32>
    %25 = vector.extract_strided_slice %24 {offsets = [0, 111], sizes = [8, 256], strides = [1, 1]} : vector<8x512xf32> to vector<8x256xf32>
    %cst_6 = arith.constant 0.000000e+00 : f32
    %26 = vector.shape_cast %20 : vector<1x256xi1> to vector<1x256xi1>
    %27 = vector.broadcast %26 : vector<1x256xi1> to vector<8x256xi1>
    %28 = vector.broadcast %cst_6 : f32 to vector<8x256xf32>
    %29 = arith.select %27, %25, %28 : vector<8x256xi1>, vector<8x256xf32>
    %30 = vector.extract_strided_slice %24 {offsets = [0, 112], sizes = [8, 256], strides = [1, 1]} : vector<8x512xf32> to vector<8x256xf32>
    %31 = vector.extract_strided_slice %24 {offsets = [0, 113], sizes = [8, 256], strides = [1, 1]} : vector<8x512xf32> to vector<8x256xf32>
    %cst_7 = arith.constant 0.000000e+00 : f32
    %32 = vector.shape_cast %22 : vector<1x256xi1> to vector<1x256xi1>
    %33 = vector.broadcast %32 : vector<1x256xi1> to vector<8x256xi1>
    %34 = vector.broadcast %cst_7 : f32 to vector<8x256xf32>
    %35 = arith.select %33, %31, %34 : vector<8x256xi1>, vector<8x256xf32>
    %36 = vector.extract_strided_slice %24 {offsets = [0, 127], sizes = [8, 256], strides = [1, 1]} : vector<8x512xf32> to vector<8x256xf32>
    %cst_8 = arith.constant 0.000000e+00 : f32
    %37 = vector.shape_cast %20 : vector<1x256xi1> to vector<1x256xi1>
    %38 = vector.broadcast %37 : vector<1x256xi1> to vector<8x256xi1>
    %39 = vector.broadcast %cst_8 : f32 to vector<8x256xf32>
    %40 = arith.select %38, %36, %39 : vector<8x256xi1>, vector<8x256xf32>
    %41 = vector.extract_strided_slice %24 {offsets = [0, 128], sizes = [8, 256], strides = [1, 1]} : vector<8x512xf32> to vector<8x256xf32>
    %42 = vector.extract_strided_slice %24 {offsets = [0, 129], sizes = [8, 256], strides = [1, 1]} : vector<8x512xf32> to vector<8x256xf32>
    %cst_9 = arith.constant 0.000000e+00 : f32
    %43 = vector.shape_cast %22 : vector<1x256xi1> to vector<1x256xi1>
    %44 = vector.broadcast %43 : vector<1x256xi1> to vector<8x256xi1>
    %45 = vector.broadcast %cst_9 : f32 to vector<8x256xf32>
    %46 = arith.select %44, %42, %45 : vector<8x256xi1>, vector<8x256xf32>
    %47 = vector.extract_strided_slice %24 {offsets = [0, 143], sizes = [8, 256], strides = [1, 1]} : vector<8x512xf32> to vector<8x256xf32>
    %cst_10 = arith.constant 0.000000e+00 : f32
    %48 = vector.shape_cast %20 : vector<1x256xi1> to vector<1x256xi1>
    %49 = vector.broadcast %48 : vector<1x256xi1> to vector<8x256xi1>
    %50 = vector.broadcast %cst_10 : f32 to vector<8x256xf32>
    %51 = arith.select %49, %47, %50 : vector<8x256xi1>, vector<8x256xf32>
    %52 = vector.extract_strided_slice %24 {offsets = [0, 144], sizes = [8, 256], strides = [1, 1]} : vector<8x512xf32> to vector<8x256xf32>
    %53 = vector.extract_strided_slice %24 {offsets = [0, 145], sizes = [8, 256], strides = [1, 1]} : vector<8x512xf32> to vector<8x256xf32>
    %cst_11 = arith.constant 0.000000e+00 : f32
    %54 = vector.shape_cast %22 : vector<1x256xi1> to vector<1x256xi1>
    %55 = vector.broadcast %54 : vector<1x256xi1> to vector<8x256xi1>
    %56 = vector.broadcast %cst_11 : f32 to vector<8x256xf32>
    %57 = arith.select %55, %53, %56 : vector<8x256xi1>, vector<8x256xf32>
    %58 = tpu.concatenate %29, %30, %35, %40, %41, %46, %51, %52, %57 in 0 : vector<8x256xf32>, vector<8x256xf32>, vector<8x256xf32>, vector<8x256xf32>, vector<8x256xf32>, vector<8x256xf32>, vector<8x256xf32>, vector<8x256xf32>, vector<8x256xf32> -> vector<72x256xf32>
    %c0_12 = arith.constant 0 : index
    %c0_13 = arith.constant 0 : index
    %59 = vector.load %arg3[%c0_12, %c0_13] : memref<8x72xf32, #tpu.memory_space<vmem>>, vector<8x72xf32>
    %cst_14 = arith.constant dense<0.000000e+00> : vector<8x256xf32>
    %60 = tpu.matmul %59, %58, %cst_14 {dimension_numbers = #tpu.dot_dimension_numbers<[1], [0], [0], [1], [0, 0, 1, 1], [], []>} : vector<8x72xf32>, vector<72x256xf32>, vector<8x256xf32> -> vector<8x256xf32>
    %c0_15 = arith.constant 0 : index
    %c0_16 = arith.constant 0 : index
    %61 = vector.load %arg4[%c0_15, %c0_16] : memref<8x1xf32, #tpu.memory_space<vmem>>, vector<8x1xf32>
    %c0_17 = arith.constant 0 : index
    %c0_18 = arith.constant 0 : index
    %62 = vector.load %arg5[%c0_17, %c0_18] : memref<8x1xf32, #tpu.memory_space<vmem>>, vector<8x1xf32>
    %cst_19 = arith.constant dense<0.000000e+00> : vector<8xf32>
    %63 = vector.multi_reduction <add>, %60, %cst_19 [1] : vector<8x256xf32> to vector<8xf32>
    %64 = vector.shape_cast %63 : vector<8xf32> to vector<8x1xf32>
    %cst_20 = arith.constant 2.560000e+02 : f32
    %65 = vector.broadcast %cst_20 : f32 to vector<8x1xf32>
    %66 = arith.divf %64, %65 : vector<8x1xf32>
    %cst_21 = arith.constant dense<0.000000e+00> : vector<1xf32>
    %67 = vector.multi_reduction <add>, %66, %cst_21 [0] : vector<8x1xf32> to vector<1xf32>
    %68 = vector.shape_cast %67 : vector<1xf32> to vector<1x1xf32>
    %cst_22 = arith.constant 8.000000e+00 : f32
    %69 = vector.broadcast %cst_22 : f32 to vector<1x1xf32>
    %70 = arith.divf %68, %69 : vector<1x1xf32>
    %71 = vector.broadcast %70 : vector<1x1xf32> to vector<8x256xf32>
    %72 = arith.subf %60, %71 : vector<8x256xf32>
    %73 = arith.mulf %72, %72 : vector<8x256xf32>
    %cst_23 = arith.constant dense<0.000000e+00> : vector<8xf32>
    %74 = vector.multi_reduction <add>, %73, %cst_23 [1] : vector<8x256xf32> to vector<8xf32>
    %75 = vector.shape_cast %74 : vector<8xf32> to vector<8x1xf32>
    %cst_24 = arith.constant 2.560000e+02 : f32
    %76 = vector.broadcast %cst_24 : f32 to vector<8x1xf32>
    %77 = arith.divf %75, %76 : vector<8x1xf32>
    %cst_25 = arith.constant dense<0.000000e+00> : vector<1xf32>
    %78 = vector.multi_reduction <add>, %77, %cst_25 [0] : vector<8x1xf32> to vector<1xf32>
    %79 = vector.shape_cast %78 : vector<1xf32> to vector<1x1xf32>
    %cst_26 = arith.constant 8.000000e+00 : f32
    %80 = vector.broadcast %cst_26 : f32 to vector<1x1xf32>
    %81 = arith.divf %79, %80 : vector<1x1xf32>
    %82 = vector.broadcast %70 : vector<1x1xf32> to vector<8x256xf32>
    %83 = arith.subf %60, %82 : vector<8x256xf32>
    %cst_27 = arith.constant 9.99999974E-6 : f32
    %84 = vector.broadcast %cst_27 : f32 to vector<1x1xf32>
    %85 = arith.addf %81, %84 : vector<1x1xf32>
    %86 = math.rsqrt %85 : vector<1x1xf32>
    %87 = vector.broadcast %86 : vector<1x1xf32> to vector<8x256xf32>
    %88 = arith.mulf %83, %87 : vector<8x256xf32>
    %89 = vector.broadcast %61 : vector<8x1xf32> to vector<8x256xf32>
    %90 = arith.mulf %88, %89 : vector<8x256xf32>
    %91 = vector.broadcast %62 : vector<8x1xf32> to vector<8x256xf32>
    %92 = arith.addf %90, %91 : vector<8x256xf32>
    %cst_28 = arith.constant 5.000000e-01 : f32
    %93 = vector.broadcast %cst_28 : f32 to vector<8x256xf32>
    %94 = arith.mulf %93, %92 : vector<8x256xf32>
    %cst_29 = arith.constant 0.707106769 : f32
    %95 = vector.broadcast %cst_29 : f32 to vector<8x256xf32>
    %96 = arith.mulf %92, %95 : vector<8x256xf32>
    %cst_30 = arith.constant -4.000000e+00 : f32
    %cst_31 = arith.constant 4.000000e+00 : f32
    %97 = vector.broadcast %cst_30 : f32 to vector<8x256xf32>
    %98 = arith.maximumf %97, %96 : vector<8x256xf32>
    %99 = vector.broadcast %cst_31 : f32 to vector<8x256xf32>
    %100 = arith.minimumf %99, %98 : vector<8x256xf32>
    %101 = arith.mulf %100, %100 : vector<8x256xf32>
    %cst_32 = arith.constant -2.72614237E-10 : f32
    %102 = vector.broadcast %cst_32 : f32 to vector<8x256xf32>
    %103 = arith.mulf %102, %101 : vector<8x256xf32>
    %cst_33 = arith.constant 2.77068146E-8 : f32
    %104 = vector.broadcast %cst_33 : f32 to vector<8x256xf32>
    %105 = arith.addf %103, %104 : vector<8x256xf32>
    %106 = arith.mulf %105, %101 : vector<8x256xf32>
    %cst_34 = arith.constant -2.10102394E-6 : f32
    %107 = vector.broadcast %cst_34 : f32 to vector<8x256xf32>
    %108 = arith.addf %106, %107 : vector<8x256xf32>
    %109 = arith.mulf %108, %101 : vector<8x256xf32>
    %cst_35 = arith.constant -5.69250624E-5 : f32
    %110 = vector.broadcast %cst_35 : f32 to vector<8x256xf32>
    %111 = arith.addf %109, %110 : vector<8x256xf32>
    %112 = arith.mulf %111, %101 : vector<8x256xf32>
    %cst_36 = arith.constant -7.34990637E-4 : f32
    %113 = vector.broadcast %cst_36 : f32 to vector<8x256xf32>
    %114 = arith.addf %112, %113 : vector<8x256xf32>
    %115 = arith.mulf %114, %101 : vector<8x256xf32>
    %cst_37 = arith.constant -2.954600e-03 : f32
    %116 = vector.broadcast %cst_37 : f32 to vector<8x256xf32>
    %117 = arith.addf %115, %116 : vector<8x256xf32>
    %118 = arith.mulf %117, %101 : vector<8x256xf32>
    %cst_38 = arith.constant -0.0160960332 : f32
    %119 = vector.broadcast %cst_38 : f32 to vector<8x256xf32>
    %120 = arith.addf %118, %119 : vector<8x256xf32>
    %121 = arith.mulf %120, %100 : vector<8x256xf32>
    %cst_39 = arith.constant -1.45660715E-5 : f32
    %122 = vector.broadcast %cst_39 : f32 to vector<8x256xf32>
    %123 = arith.mulf %122, %101 : vector<8x256xf32>
    %cst_40 = arith.constant -2.13374049E-4 : f32
    %124 = vector.broadcast %cst_40 : f32 to vector<8x256xf32>
    %125 = arith.addf %123, %124 : vector<8x256xf32>
    %126 = arith.mulf %125, %101 : vector<8x256xf32>
    %cst_41 = arith.constant -0.00168282702 : f32
    %127 = vector.broadcast %cst_41 : f32 to vector<8x256xf32>
    %128 = arith.addf %126, %127 : vector<8x256xf32>
    %129 = arith.mulf %128, %101 : vector<8x256xf32>
    %cst_42 = arith.constant -0.00737332925 : f32
    %130 = vector.broadcast %cst_42 : f32 to vector<8x256xf32>
    %131 = arith.addf %129, %130 : vector<8x256xf32>
    %132 = arith.mulf %131, %101 : vector<8x256xf32>
    %cst_43 = arith.constant -0.0142647391 : f32
    %133 = vector.broadcast %cst_43 : f32 to vector<8x256xf32>
    %134 = arith.addf %132, %133 : vector<8x256xf32>
    %135 = arith.divf %121, %134 : vector<8x256xf32>
    %cst_44 = arith.constant -1.000000e+00 : f32
    %cst_45 = arith.constant 1.000000e+00 : f32
    %136 = vector.broadcast %cst_44 : f32 to vector<8x256xf32>
    %137 = arith.maximumf %136, %135 : vector<8x256xf32>
    %138 = vector.broadcast %cst_45 : f32 to vector<8x256xf32>
    %139 = arith.minimumf %138, %137 : vector<8x256xf32>
    %cst_46 = arith.constant 1.000000e+00 : f32
    %140 = vector.broadcast %cst_46 : f32 to vector<8x256xf32>
    %141 = arith.addf %140, %139 : vector<8x256xf32>
    %142 = arith.mulf %94, %141 : vector<8x256xf32>
    %cst_47 = arith.constant 0.000000e+00 : f32
    %143 = vector.broadcast %cst_47 : f32 to vector<8x128xf32>
    %144 = tpu.concatenate %143, %142, %143 in 1 : vector<8x128xf32>, vector<8x256xf32>, vector<8x128xf32> -> vector<8x512xf32>
    %145 = vector.extract_strided_slice %144 {offsets = [0, 111], sizes = [8, 256], strides = [1, 1]} : vector<8x512xf32> to vector<8x256xf32>
    %cst_48 = arith.constant 0.000000e+00 : f32
    %146 = vector.shape_cast %20 : vector<1x256xi1> to vector<1x256xi1>
    %147 = vector.broadcast %146 : vector<1x256xi1> to vector<8x256xi1>
    %148 = vector.broadcast %cst_48 : f32 to vector<8x256xf32>
    %149 = arith.select %147, %145, %148 : vector<8x256xi1>, vector<8x256xf32>
    %150 = vector.extract_strided_slice %144 {offsets = [0, 112], sizes = [8, 256], strides = [1, 1]} : vector<8x512xf32> to vector<8x256xf32>
    %151 = vector.extract_strided_slice %144 {offsets = [0, 113], sizes = [8, 256], strides = [1, 1]} : vector<8x512xf32> to vector<8x256xf32>
    %cst_49 = arith.constant 0.000000e+00 : f32
    %152 = vector.shape_cast %22 : vector<1x256xi1> to vector<1x256xi1>
    %153 = vector.broadcast %152 : vector<1x256xi1> to vector<8x256xi1>
    %154 = vector.broadcast %cst_49 : f32 to vector<8x256xf32>
    %155 = arith.select %153, %151, %154 : vector<8x256xi1>, vector<8x256xf32>
    %156 = vector.extract_strided_slice %144 {offsets = [0, 127], sizes = [8, 256], strides = [1, 1]} : vector<8x512xf32> to vector<8x256xf32>
    %cst_50 = arith.constant 0.000000e+00 : f32
    %157 = vector.shape_cast %20 : vector<1x256xi1> to vector<1x256xi1>
    %158 = vector.broadcast %157 : vector<1x256xi1> to vector<8x256xi1>
    %159 = vector.broadcast %cst_50 : f32 to vector<8x256xf32>
    %160 = arith.select %158, %156, %159 : vector<8x256xi1>, vector<8x256xf32>
    %161 = vector.extract_strided_slice %144 {offsets = [0, 128], sizes = [8, 256], strides = [1, 1]} : vector<8x512xf32> to vector<8x256xf32>
    %162 = vector.extract_strided_slice %144 {offsets = [0, 129], sizes = [8, 256], strides = [1, 1]} : vector<8x512xf32> to vector<8x256xf32>
    %cst_51 = arith.constant 0.000000e+00 : f32
    %163 = vector.shape_cast %22 : vector<1x256xi1> to vector<1x256xi1>
    %164 = vector.broadcast %163 : vector<1x256xi1> to vector<8x256xi1>
    %165 = vector.broadcast %cst_51 : f32 to vector<8x256xf32>
    %166 = arith.select %164, %162, %165 : vector<8x256xi1>, vector<8x256xf32>
    %167 = vector.extract_strided_slice %144 {offsets = [0, 143], sizes = [8, 256], strides = [1, 1]} : vector<8x512xf32> to vector<8x256xf32>
    %cst_52 = arith.constant 0.000000e+00 : f32
    %168 = vector.shape_cast %20 : vector<1x256xi1> to vector<1x256xi1>
    %169 = vector.broadcast %168 : vector<1x256xi1> to vector<8x256xi1>
    %170 = vector.broadcast %cst_52 : f32 to vector<8x256xf32>
    %171 = arith.select %169, %167, %170 : vector<8x256xi1>, vector<8x256xf32>
    %172 = vector.extract_strided_slice %144 {offsets = [0, 144], sizes = [8, 256], strides = [1, 1]} : vector<8x512xf32> to vector<8x256xf32>
    %173 = vector.extract_strided_slice %144 {offsets = [0, 145], sizes = [8, 256], strides = [1, 1]} : vector<8x512xf32> to vector<8x256xf32>
    %cst_53 = arith.constant 0.000000e+00 : f32
    %174 = vector.shape_cast %22 : vector<1x256xi1> to vector<1x256xi1>
    %175 = vector.broadcast %174 : vector<1x256xi1> to vector<8x256xi1>
    %176 = vector.broadcast %cst_53 : f32 to vector<8x256xf32>
    %177 = arith.select %175, %173, %176 : vector<8x256xi1>, vector<8x256xf32>
    %178 = tpu.concatenate %149, %150, %155, %160, %161, %166, %171, %172, %177 in 0 : vector<8x256xf32>, vector<8x256xf32>, vector<8x256xf32>, vector<8x256xf32>, vector<8x256xf32>, vector<8x256xf32>, vector<8x256xf32>, vector<8x256xf32>, vector<8x256xf32> -> vector<72x256xf32>
    %c0_54 = arith.constant 0 : index
    %c0_55 = arith.constant 0 : index
    %179 = vector.load %arg6[%c0_54, %c0_55] : memref<8x72xf32, #tpu.memory_space<vmem>>, vector<8x72xf32>
    %cst_56 = arith.constant dense<0.000000e+00> : vector<8x256xf32>
    %180 = tpu.matmul %179, %178, %cst_56 {dimension_numbers = #tpu.dot_dimension_numbers<[1], [0], [0], [1], [0, 0, 1, 1], [], []>} : vector<8x72xf32>, vector<72x256xf32>, vector<8x256xf32> -> vector<8x256xf32>
    %c0_57 = arith.constant 0 : index
    %c0_58 = arith.constant 0 : index
    %181 = vector.load %arg7[%c0_57, %c0_58] : memref<8x1xf32, #tpu.memory_space<vmem>>, vector<8x1xf32>
    %c0_59 = arith.constant 0 : index
    %c0_60 = arith.constant 0 : index
    %182 = vector.load %arg8[%c0_59, %c0_60] : memref<8x1xf32, #tpu.memory_space<vmem>>, vector<8x1xf32>
    %cst_61 = arith.constant dense<0.000000e+00> : vector<8xf32>
    %183 = vector.multi_reduction <add>, %180, %cst_61 [1] : vector<8x256xf32> to vector<8xf32>
    %184 = vector.shape_cast %183 : vector<8xf32> to vector<8x1xf32>
    %cst_62 = arith.constant 2.560000e+02 : f32
    %185 = vector.broadcast %cst_62 : f32 to vector<8x1xf32>
    %186 = arith.divf %184, %185 : vector<8x1xf32>
    %cst_63 = arith.constant dense<0.000000e+00> : vector<1xf32>
    %187 = vector.multi_reduction <add>, %186, %cst_63 [0] : vector<8x1xf32> to vector<1xf32>
    %188 = vector.shape_cast %187 : vector<1xf32> to vector<1x1xf32>
    %cst_64 = arith.constant 8.000000e+00 : f32
    %189 = vector.broadcast %cst_64 : f32 to vector<1x1xf32>
    %190 = arith.divf %188, %189 : vector<1x1xf32>
    %191 = vector.broadcast %190 : vector<1x1xf32> to vector<8x256xf32>
    %192 = arith.subf %180, %191 : vector<8x256xf32>
    %193 = arith.mulf %192, %192 : vector<8x256xf32>
    %cst_65 = arith.constant dense<0.000000e+00> : vector<8xf32>
    %194 = vector.multi_reduction <add>, %193, %cst_65 [1] : vector<8x256xf32> to vector<8xf32>
    %195 = vector.shape_cast %194 : vector<8xf32> to vector<8x1xf32>
    %cst_66 = arith.constant 2.560000e+02 : f32
    %196 = vector.broadcast %cst_66 : f32 to vector<8x1xf32>
    %197 = arith.divf %195, %196 : vector<8x1xf32>
    %cst_67 = arith.constant dense<0.000000e+00> : vector<1xf32>
    %198 = vector.multi_reduction <add>, %197, %cst_67 [0] : vector<8x1xf32> to vector<1xf32>
    %199 = vector.shape_cast %198 : vector<1xf32> to vector<1x1xf32>
    %cst_68 = arith.constant 8.000000e+00 : f32
    %200 = vector.broadcast %cst_68 : f32 to vector<1x1xf32>
    %201 = arith.divf %199, %200 : vector<1x1xf32>
    %202 = vector.broadcast %190 : vector<1x1xf32> to vector<8x256xf32>
    %203 = arith.subf %180, %202 : vector<8x256xf32>
    %cst_69 = arith.constant 9.99999974E-6 : f32
    %204 = vector.broadcast %cst_69 : f32 to vector<1x1xf32>
    %205 = arith.addf %201, %204 : vector<1x1xf32>
    %206 = math.rsqrt %205 : vector<1x1xf32>
    %207 = vector.broadcast %206 : vector<1x1xf32> to vector<8x256xf32>
    %208 = arith.mulf %203, %207 : vector<8x256xf32>
    %209 = vector.broadcast %181 : vector<8x1xf32> to vector<8x256xf32>
    %210 = arith.mulf %208, %209 : vector<8x256xf32>
    %211 = vector.broadcast %182 : vector<8x1xf32> to vector<8x256xf32>
    %212 = arith.addf %210, %211 : vector<8x256xf32>
    %213 = arith.addf %1, %212 : vector<8x256xf32>
    %cst_70 = arith.constant 5.000000e-01 : f32
    %214 = vector.broadcast %cst_70 : f32 to vector<8x256xf32>
    %215 = arith.mulf %214, %213 : vector<8x256xf32>
    %cst_71 = arith.constant 0.707106769 : f32
    %216 = vector.broadcast %cst_71 : f32 to vector<8x256xf32>
    %217 = arith.mulf %213, %216 : vector<8x256xf32>
    %cst_72 = arith.constant -4.000000e+00 : f32
    %cst_73 = arith.constant 4.000000e+00 : f32
    %218 = vector.broadcast %cst_72 : f32 to vector<8x256xf32>
    %219 = arith.maximumf %218, %217 : vector<8x256xf32>
    %220 = vector.broadcast %cst_73 : f32 to vector<8x256xf32>
    %221 = arith.minimumf %220, %219 : vector<8x256xf32>
    %222 = arith.mulf %221, %221 : vector<8x256xf32>
    %cst_74 = arith.constant -2.72614237E-10 : f32
    %223 = vector.broadcast %cst_74 : f32 to vector<8x256xf32>
    %224 = arith.mulf %223, %222 : vector<8x256xf32>
    %cst_75 = arith.constant 2.77068146E-8 : f32
    %225 = vector.broadcast %cst_75 : f32 to vector<8x256xf32>
    %226 = arith.addf %224, %225 : vector<8x256xf32>
    %227 = arith.mulf %226, %222 : vector<8x256xf32>
    %cst_76 = arith.constant -2.10102394E-6 : f32
    %228 = vector.broadcast %cst_76 : f32 to vector<8x256xf32>
    %229 = arith.addf %227, %228 : vector<8x256xf32>
    %230 = arith.mulf %229, %222 : vector<8x256xf32>
    %cst_77 = arith.constant -5.69250624E-5 : f32
    %231 = vector.broadcast %cst_77 : f32 to vector<8x256xf32>
    %232 = arith.addf %230, %231 : vector<8x256xf32>
    %233 = arith.mulf %232, %222 : vector<8x256xf32>
    %cst_78 = arith.constant -7.34990637E-4 : f32
    %234 = vector.broadcast %cst_78 : f32 to vector<8x256xf32>
    %235 = arith.addf %233, %234 : vector<8x256xf32>
    %236 = arith.mulf %235, %222 : vector<8x256xf32>
    %cst_79 = arith.constant -2.954600e-03 : f32
    %237 = vector.broadcast %cst_79 : f32 to vector<8x256xf32>
    %238 = arith.addf %236, %237 : vector<8x256xf32>
    %239 = arith.mulf %238, %222 : vector<8x256xf32>
    %cst_80 = arith.constant -0.0160960332 : f32
    %240 = vector.broadcast %cst_80 : f32 to vector<8x256xf32>
    %241 = arith.addf %239, %240 : vector<8x256xf32>
    %242 = arith.mulf %241, %221 : vector<8x256xf32>
    %cst_81 = arith.constant -1.45660715E-5 : f32
    %243 = vector.broadcast %cst_81 : f32 to vector<8x256xf32>
    %244 = arith.mulf %243, %222 : vector<8x256xf32>
    %cst_82 = arith.constant -2.13374049E-4 : f32
    %245 = vector.broadcast %cst_82 : f32 to vector<8x256xf32>
    %246 = arith.addf %244, %245 : vector<8x256xf32>
    %247 = arith.mulf %246, %222 : vector<8x256xf32>
    %cst_83 = arith.constant -0.00168282702 : f32
    %248 = vector.broadcast %cst_83 : f32 to vector<8x256xf32>
    %249 = arith.addf %247, %248 : vector<8x256xf32>
    %250 = arith.mulf %249, %222 : vector<8x256xf32>
    %cst_84 = arith.constant -0.00737332925 : f32
    %251 = vector.broadcast %cst_84 : f32 to vector<8x256xf32>
    %252 = arith.addf %250, %251 : vector<8x256xf32>
    %253 = arith.mulf %252, %222 : vector<8x256xf32>
    %cst_85 = arith.constant -0.0142647391 : f32
    %254 = vector.broadcast %cst_85 : f32 to vector<8x256xf32>
    %255 = arith.addf %253, %254 : vector<8x256xf32>
    %256 = arith.divf %242, %255 : vector<8x256xf32>
    %cst_86 = arith.constant -1.000000e+00 : f32
    %cst_87 = arith.constant 1.000000e+00 : f32
    %257 = vector.broadcast %cst_86 : f32 to vector<8x256xf32>
    %258 = arith.maximumf %257, %256 : vector<8x256xf32>
    %259 = vector.broadcast %cst_87 : f32 to vector<8x256xf32>
    %260 = arith.minimumf %259, %258 : vector<8x256xf32>
    %cst_88 = arith.constant 1.000000e+00 : f32
    %261 = vector.broadcast %cst_88 : f32 to vector<8x256xf32>
    %262 = arith.addf %261, %260 : vector<8x256xf32>
    %263 = arith.mulf %215, %262 : vector<8x256xf32>
    %cst_89 = arith.constant 0.000000e+00 : f32
    %264 = vector.broadcast %cst_89 : f32 to vector<8x128xf32>
    %265 = tpu.concatenate %264, %263, %264 in 1 : vector<8x128xf32>, vector<8x256xf32>, vector<8x128xf32> -> vector<8x512xf32>
    %266 = vector.extract_strided_slice %265 {offsets = [0, 111], sizes = [8, 256], strides = [1, 1]} : vector<8x512xf32> to vector<8x256xf32>
    %cst_90 = arith.constant 0.000000e+00 : f32
    %267 = vector.shape_cast %20 : vector<1x256xi1> to vector<1x256xi1>
    %268 = vector.broadcast %267 : vector<1x256xi1> to vector<8x256xi1>
    %269 = vector.broadcast %cst_90 : f32 to vector<8x256xf32>
    %270 = arith.select %268, %266, %269 : vector<8x256xi1>, vector<8x256xf32>
    %271 = vector.extract_strided_slice %265 {offsets = [0, 112], sizes = [8, 256], strides = [1, 1]} : vector<8x512xf32> to vector<8x256xf32>
    %272 = vector.extract_strided_slice %265 {offsets = [0, 113], sizes = [8, 256], strides = [1, 1]} : vector<8x512xf32> to vector<8x256xf32>
    %cst_91 = arith.constant 0.000000e+00 : f32
    %273 = vector.shape_cast %22 : vector<1x256xi1> to vector<1x256xi1>
    %274 = vector.broadcast %273 : vector<1x256xi1> to vector<8x256xi1>
    %275 = vector.broadcast %cst_91 : f32 to vector<8x256xf32>
    %276 = arith.select %274, %272, %275 : vector<8x256xi1>, vector<8x256xf32>
    %277 = vector.extract_strided_slice %265 {offsets = [0, 127], sizes = [8, 256], strides = [1, 1]} : vector<8x512xf32> to vector<8x256xf32>
    %cst_92 = arith.constant 0.000000e+00 : f32
    %278 = vector.shape_cast %20 : vector<1x256xi1> to vector<1x256xi1>
    %279 = vector.broadcast %278 : vector<1x256xi1> to vector<8x256xi1>
    %280 = vector.broadcast %cst_92 : f32 to vector<8x256xf32>
    %281 = arith.select %279, %277, %280 : vector<8x256xi1>, vector<8x256xf32>
    %282 = vector.extract_strided_slice %265 {offsets = [0, 128], sizes = [8, 256], strides = [1, 1]} : vector<8x512xf32> to vector<8x256xf32>
    %283 = vector.extract_strided_slice %265 {offsets = [0, 129], sizes = [8, 256], strides = [1, 1]} : vector<8x512xf32> to vector<8x256xf32>
    %cst_93 = arith.constant 0.000000e+00 : f32
    %284 = vector.shape_cast %22 : vector<1x256xi1> to vector<1x256xi1>
    %285 = vector.broadcast %284 : vector<1x256xi1> to vector<8x256xi1>
    %286 = vector.broadcast %cst_93 : f32 to vector<8x256xf32>
    %287 = arith.select %285, %283, %286 : vector<8x256xi1>, vector<8x256xf32>
    %288 = vector.extract_strided_slice %265 {offsets = [0, 143], sizes = [8, 256], strides = [1, 1]} : vector<8x512xf32> to vector<8x256xf32>
    %cst_94 = arith.constant 0.000000e+00 : f32
    %289 = vector.shape_cast %20 : vector<1x256xi1> to vector<1x256xi1>
    %290 = vector.broadcast %289 : vector<1x256xi1> to vector<8x256xi1>
    %291 = vector.broadcast %cst_94 : f32 to vector<8x256xf32>
    %292 = arith.select %290, %288, %291 : vector<8x256xi1>, vector<8x256xf32>
    %293 = vector.extract_strided_slice %265 {offsets = [0, 144], sizes = [8, 256], strides = [1, 1]} : vector<8x512xf32> to vector<8x256xf32>
    %294 = vector.extract_strided_slice %265 {offsets = [0, 145], sizes = [8, 256], strides = [1, 1]} : vector<8x512xf32> to vector<8x256xf32>
    %cst_95 = arith.constant 0.000000e+00 : f32
    %295 = vector.shape_cast %22 : vector<1x256xi1> to vector<1x256xi1>
    %296 = vector.broadcast %295 : vector<1x256xi1> to vector<8x256xi1>
    %297 = vector.broadcast %cst_95 : f32 to vector<8x256xf32>
    %298 = arith.select %296, %294, %297 : vector<8x256xi1>, vector<8x256xf32>
    %299 = tpu.concatenate %270, %271, %276, %281, %282, %287, %292, %293, %298 in 0 : vector<8x256xf32>, vector<8x256xf32>, vector<8x256xf32>, vector<8x256xf32>, vector<8x256xf32>, vector<8x256xf32>, vector<8x256xf32>, vector<8x256xf32>, vector<8x256xf32> -> vector<72x256xf32>
    %c0_96 = arith.constant 0 : index
    %c0_97 = arith.constant 0 : index
    %300 = vector.load %arg9[%c0_96, %c0_97] : memref<8x72xf32, #tpu.memory_space<vmem>>, vector<8x72xf32>
    %cst_98 = arith.constant dense<0.000000e+00> : vector<8x256xf32>
    %301 = tpu.matmul %300, %299, %cst_98 {dimension_numbers = #tpu.dot_dimension_numbers<[1], [0], [0], [1], [0, 0, 1, 1], [], []>} : vector<8x72xf32>, vector<72x256xf32>, vector<8x256xf32> -> vector<8x256xf32>
    %c0_99 = arith.constant 0 : index
    %c0_100 = arith.constant 0 : index
    %302 = vector.load %arg10[%c0_99, %c0_100] : memref<8x1xf32, #tpu.memory_space<vmem>>, vector<8x1xf32>
    %c0_101 = arith.constant 0 : index
    %c0_102 = arith.constant 0 : index
    %303 = vector.load %arg11[%c0_101, %c0_102] : memref<8x1xf32, #tpu.memory_space<vmem>>, vector<8x1xf32>
    %304 = vector.extract_strided_slice %301 {offsets = [0, 0], sizes = [4, 256], strides = [1, 1]} : vector<8x256xf32> to vector<4x256xf32>
    %cst_103 = arith.constant dense<0.000000e+00> : vector<4xf32>
    %305 = vector.multi_reduction <add>, %304, %cst_103 [1] : vector<4x256xf32> to vector<4xf32>
    %306 = vector.shape_cast %305 : vector<4xf32> to vector<4x1xf32>
    %cst_104 = arith.constant 2.560000e+02 : f32
    %307 = vector.broadcast %cst_104 : f32 to vector<4x1xf32>
    %308 = arith.divf %306, %307 : vector<4x1xf32>
    %cst_105 = arith.constant dense<0.000000e+00> : vector<1xf32>
    %309 = vector.multi_reduction <add>, %308, %cst_105 [0] : vector<4x1xf32> to vector<1xf32>
    %310 = vector.shape_cast %309 : vector<1xf32> to vector<1x1xf32>
    %cst_106 = arith.constant 4.000000e+00 : f32
    %311 = vector.broadcast %cst_106 : f32 to vector<1x1xf32>
    %312 = arith.divf %310, %311 : vector<1x1xf32>
    %313 = vector.broadcast %312 : vector<1x1xf32> to vector<4x256xf32>
    %314 = arith.subf %304, %313 : vector<4x256xf32>
    %315 = arith.mulf %314, %314 : vector<4x256xf32>
    %cst_107 = arith.constant dense<0.000000e+00> : vector<4xf32>
    %316 = vector.multi_reduction <add>, %315, %cst_107 [1] : vector<4x256xf32> to vector<4xf32>
    %317 = vector.shape_cast %316 : vector<4xf32> to vector<4x1xf32>
    %cst_108 = arith.constant 2.560000e+02 : f32
    %318 = vector.broadcast %cst_108 : f32 to vector<4x1xf32>
    %319 = arith.divf %317, %318 : vector<4x1xf32>
    %cst_109 = arith.constant dense<0.000000e+00> : vector<1xf32>
    %320 = vector.multi_reduction <add>, %319, %cst_109 [0] : vector<4x1xf32> to vector<1xf32>
    %321 = vector.shape_cast %320 : vector<1xf32> to vector<1x1xf32>
    %cst_110 = arith.constant 4.000000e+00 : f32
    %322 = vector.broadcast %cst_110 : f32 to vector<1x1xf32>
    %323 = arith.divf %321, %322 : vector<1x1xf32>
    %324 = vector.broadcast %312 : vector<1x1xf32> to vector<8x256xf32>
    %325 = arith.subf %301, %324 : vector<8x256xf32>
    %cst_111 = arith.constant 9.99999974E-6 : f32
    %326 = vector.broadcast %cst_111 : f32 to vector<1x1xf32>
    %327 = arith.addf %323, %326 : vector<1x1xf32>
    %328 = math.rsqrt %327 : vector<1x1xf32>
    %329 = vector.broadcast %328 : vector<1x1xf32> to vector<8x256xf32>
    %330 = arith.mulf %325, %329 : vector<8x256xf32>
    %331 = vector.broadcast %302 : vector<8x1xf32> to vector<8x256xf32>
    %332 = arith.mulf %330, %331 : vector<8x256xf32>
    %333 = vector.broadcast %303 : vector<8x1xf32> to vector<8x256xf32>
    %334 = arith.addf %332, %333 : vector<8x256xf32>
    %cst_112 = arith.constant 5.000000e-01 : f32
    %335 = vector.broadcast %cst_112 : f32 to vector<8x256xf32>
    %336 = arith.mulf %335, %334 : vector<8x256xf32>
    %cst_113 = arith.constant 0.707106769 : f32
    %337 = vector.broadcast %cst_113 : f32 to vector<8x256xf32>
    %338 = arith.mulf %334, %337 : vector<8x256xf32>
    %cst_114 = arith.constant -4.000000e+00 : f32
    %cst_115 = arith.constant 4.000000e+00 : f32
    %339 = vector.broadcast %cst_114 : f32 to vector<8x256xf32>
    %340 = arith.maximumf %339, %338 : vector<8x256xf32>
    %341 = vector.broadcast %cst_115 : f32 to vector<8x256xf32>
    %342 = arith.minimumf %341, %340 : vector<8x256xf32>
    %343 = arith.mulf %342, %342 : vector<8x256xf32>
    %cst_116 = arith.constant -2.72614237E-10 : f32
    %344 = vector.broadcast %cst_116 : f32 to vector<8x256xf32>
    %345 = arith.mulf %344, %343 : vector<8x256xf32>
    %cst_117 = arith.constant 2.77068146E-8 : f32
    %346 = vector.broadcast %cst_117 : f32 to vector<8x256xf32>
    %347 = arith.addf %345, %346 : vector<8x256xf32>
    %348 = arith.mulf %347, %343 : vector<8x256xf32>
    %cst_118 = arith.constant -2.10102394E-6 : f32
    %349 = vector.broadcast %cst_118 : f32 to vector<8x256xf32>
    %350 = arith.addf %348, %349 : vector<8x256xf32>
    %351 = arith.mulf %350, %343 : vector<8x256xf32>
    %cst_119 = arith.constant -5.69250624E-5 : f32
    %352 = vector.broadcast %cst_119 : f32 to vector<8x256xf32>
    %353 = arith.addf %351, %352 : vector<8x256xf32>
    %354 = arith.mulf %353, %343 : vector<8x256xf32>
    %cst_120 = arith.constant -7.34990637E-4 : f32
    %355 = vector.broadcast %cst_120 : f32 to vector<8x256xf32>
    %356 = arith.addf %354, %355 : vector<8x256xf32>
    %357 = arith.mulf %356, %343 : vector<8x256xf32>
    %cst_121 = arith.constant -2.954600e-03 : f32
    %358 = vector.broadcast %cst_121 : f32 to vector<8x256xf32>
    %359 = arith.addf %357, %358 : vector<8x256xf32>
    %360 = arith.mulf %359, %343 : vector<8x256xf32>
    %cst_122 = arith.constant -0.0160960332 : f32
    %361 = vector.broadcast %cst_122 : f32 to vector<8x256xf32>
    %362 = arith.addf %360, %361 : vector<8x256xf32>
    %363 = arith.mulf %362, %342 : vector<8x256xf32>
    %cst_123 = arith.constant -1.45660715E-5 : f32
    %364 = vector.broadcast %cst_123 : f32 to vector<8x256xf32>
    %365 = arith.mulf %364, %343 : vector<8x256xf32>
    %cst_124 = arith.constant -2.13374049E-4 : f32
    %366 = vector.broadcast %cst_124 : f32 to vector<8x256xf32>
    %367 = arith.addf %365, %366 : vector<8x256xf32>
    %368 = arith.mulf %367, %343 : vector<8x256xf32>
    %cst_125 = arith.constant -0.00168282702 : f32
    %369 = vector.broadcast %cst_125 : f32 to vector<8x256xf32>
    %370 = arith.addf %368, %369 : vector<8x256xf32>
    %371 = arith.mulf %370, %343 : vector<8x256xf32>
    %cst_126 = arith.constant -0.00737332925 : f32
    %372 = vector.broadcast %cst_126 : f32 to vector<8x256xf32>
    %373 = arith.addf %371, %372 : vector<8x256xf32>
    %374 = arith.mulf %373, %343 : vector<8x256xf32>
    %cst_127 = arith.constant -0.0142647391 : f32
    %375 = vector.broadcast %cst_127 : f32 to vector<8x256xf32>
    %376 = arith.addf %374, %375 : vector<8x256xf32>
    %377 = arith.divf %363, %376 : vector<8x256xf32>
    %cst_128 = arith.constant -1.000000e+00 : f32
    %cst_129 = arith.constant 1.000000e+00 : f32
    %378 = vector.broadcast %cst_128 : f32 to vector<8x256xf32>
    %379 = arith.maximumf %378, %377 : vector<8x256xf32>
    %380 = vector.broadcast %cst_129 : f32 to vector<8x256xf32>
    %381 = arith.minimumf %380, %379 : vector<8x256xf32>
    %cst_130 = arith.constant 1.000000e+00 : f32
    %382 = vector.broadcast %cst_130 : f32 to vector<8x256xf32>
    %383 = arith.addf %382, %381 : vector<8x256xf32>
    %384 = arith.mulf %336, %383 : vector<8x256xf32>
    %cst_131 = arith.constant 0.000000e+00 : f32
    %385 = vector.broadcast %cst_131 : f32 to vector<8x128xf32>
    %386 = tpu.concatenate %385, %384, %385 in 1 : vector<8x128xf32>, vector<8x256xf32>, vector<8x128xf32> -> vector<8x512xf32>
    %387 = vector.extract_strided_slice %386 {offsets = [0, 111], sizes = [8, 256], strides = [1, 1]} : vector<8x512xf32> to vector<8x256xf32>
    %cst_132 = arith.constant 0.000000e+00 : f32
    %388 = vector.shape_cast %20 : vector<1x256xi1> to vector<1x256xi1>
    %389 = vector.broadcast %388 : vector<1x256xi1> to vector<8x256xi1>
    %390 = vector.broadcast %cst_132 : f32 to vector<8x256xf32>
    %391 = arith.select %389, %387, %390 : vector<8x256xi1>, vector<8x256xf32>
    %392 = vector.extract_strided_slice %386 {offsets = [0, 112], sizes = [8, 256], strides = [1, 1]} : vector<8x512xf32> to vector<8x256xf32>
    %393 = vector.extract_strided_slice %386 {offsets = [0, 113], sizes = [8, 256], strides = [1, 1]} : vector<8x512xf32> to vector<8x256xf32>
    %cst_133 = arith.constant 0.000000e+00 : f32
    %394 = vector.shape_cast %22 : vector<1x256xi1> to vector<1x256xi1>
    %395 = vector.broadcast %394 : vector<1x256xi1> to vector<8x256xi1>
    %396 = vector.broadcast %cst_133 : f32 to vector<8x256xf32>
    %397 = arith.select %395, %393, %396 : vector<8x256xi1>, vector<8x256xf32>
    %398 = vector.extract_strided_slice %386 {offsets = [0, 127], sizes = [8, 256], strides = [1, 1]} : vector<8x512xf32> to vector<8x256xf32>
    %cst_134 = arith.constant 0.000000e+00 : f32
    %399 = vector.shape_cast %20 : vector<1x256xi1> to vector<1x256xi1>
    %400 = vector.broadcast %399 : vector<1x256xi1> to vector<8x256xi1>
    %401 = vector.broadcast %cst_134 : f32 to vector<8x256xf32>
    %402 = arith.select %400, %398, %401 : vector<8x256xi1>, vector<8x256xf32>
    %403 = vector.extract_strided_slice %386 {offsets = [0, 128], sizes = [8, 256], strides = [1, 1]} : vector<8x512xf32> to vector<8x256xf32>
    %404 = vector.extract_strided_slice %386 {offsets = [0, 129], sizes = [8, 256], strides = [1, 1]} : vector<8x512xf32> to vector<8x256xf32>
    %cst_135 = arith.constant 0.000000e+00 : f32
    %405 = vector.shape_cast %22 : vector<1x256xi1> to vector<1x256xi1>
    %406 = vector.broadcast %405 : vector<1x256xi1> to vector<8x256xi1>
    %407 = vector.broadcast %cst_135 : f32 to vector<8x256xf32>
    %408 = arith.select %406, %404, %407 : vector<8x256xi1>, vector<8x256xf32>
    %409 = vector.extract_strided_slice %386 {offsets = [0, 143], sizes = [8, 256], strides = [1, 1]} : vector<8x512xf32> to vector<8x256xf32>
    %cst_136 = arith.constant 0.000000e+00 : f32
    %410 = vector.shape_cast %20 : vector<1x256xi1> to vector<1x256xi1>
    %411 = vector.broadcast %410 : vector<1x256xi1> to vector<8x256xi1>
    %412 = vector.broadcast %cst_136 : f32 to vector<8x256xf32>
    %413 = arith.select %411, %409, %412 : vector<8x256xi1>, vector<8x256xf32>
    %414 = vector.extract_strided_slice %386 {offsets = [0, 144], sizes = [8, 256], strides = [1, 1]} : vector<8x512xf32> to vector<8x256xf32>
    %415 = vector.extract_strided_slice %386 {offsets = [0, 145], sizes = [8, 256], strides = [1, 1]} : vector<8x512xf32> to vector<8x256xf32>
    %cst_137 = arith.constant 0.000000e+00 : f32
    %416 = vector.shape_cast %22 : vector<1x256xi1> to vector<1x256xi1>
    %417 = vector.broadcast %416 : vector<1x256xi1> to vector<8x256xi1>
    %418 = vector.broadcast %cst_137 : f32 to vector<8x256xf32>
    %419 = arith.select %417, %415, %418 : vector<8x256xi1>, vector<8x256xf32>
    %420 = tpu.concatenate %391, %392, %397, %402, %403, %408, %413, %414, %419 in 0 : vector<8x256xf32>, vector<8x256xf32>, vector<8x256xf32>, vector<8x256xf32>, vector<8x256xf32>, vector<8x256xf32>, vector<8x256xf32>, vector<8x256xf32>, vector<8x256xf32> -> vector<72x256xf32>
    %c0_138 = arith.constant 0 : index
    %c0_139 = arith.constant 0 : index
    %421 = vector.load %arg12[%c0_138, %c0_139] : memref<8x72xf32, #tpu.memory_space<vmem>>, vector<8x72xf32>
    %cst_140 = arith.constant dense<0.000000e+00> : vector<8x256xf32>
    %422 = tpu.matmul %421, %420, %cst_140 {dimension_numbers = #tpu.dot_dimension_numbers<[1], [0], [0], [1], [0, 0, 1, 1], [], []>} : vector<8x72xf32>, vector<72x256xf32>, vector<8x256xf32> -> vector<8x256xf32>
    %c0_141 = arith.constant 0 : index
    %c0_142 = arith.constant 0 : index
    %423 = vector.load %arg13[%c0_141, %c0_142] : memref<8x1xf32, #tpu.memory_space<vmem>>, vector<8x1xf32>
    %c0_143 = arith.constant 0 : index
    %c0_144 = arith.constant 0 : index
    %424 = vector.load %arg14[%c0_143, %c0_144] : memref<8x1xf32, #tpu.memory_space<vmem>>, vector<8x1xf32>
    %cst_145 = arith.constant dense<0.000000e+00> : vector<8xf32>
    %425 = vector.multi_reduction <add>, %422, %cst_145 [1] : vector<8x256xf32> to vector<8xf32>
    %426 = vector.shape_cast %425 : vector<8xf32> to vector<8x1xf32>
    %cst_146 = arith.constant 2.560000e+02 : f32
    %427 = vector.broadcast %cst_146 : f32 to vector<8x1xf32>
    %428 = arith.divf %426, %427 : vector<8x1xf32>
    %cst_147 = arith.constant dense<0.000000e+00> : vector<1xf32>
    %429 = vector.multi_reduction <add>, %428, %cst_147 [0] : vector<8x1xf32> to vector<1xf32>
    %430 = vector.shape_cast %429 : vector<1xf32> to vector<1x1xf32>
    %cst_148 = arith.constant 8.000000e+00 : f32
    %431 = vector.broadcast %cst_148 : f32 to vector<1x1xf32>
    %432 = arith.divf %430, %431 : vector<1x1xf32>
    %433 = vector.broadcast %432 : vector<1x1xf32> to vector<8x256xf32>
    %434 = arith.subf %422, %433 : vector<8x256xf32>
    %435 = arith.mulf %434, %434 : vector<8x256xf32>
    %cst_149 = arith.constant dense<0.000000e+00> : vector<8xf32>
    %436 = vector.multi_reduction <add>, %435, %cst_149 [1] : vector<8x256xf32> to vector<8xf32>
    %437 = vector.shape_cast %436 : vector<8xf32> to vector<8x1xf32>
    %cst_150 = arith.constant 2.560000e+02 : f32
    %438 = vector.broadcast %cst_150 : f32 to vector<8x1xf32>
    %439 = arith.divf %437, %438 : vector<8x1xf32>
    %cst_151 = arith.constant dense<0.000000e+00> : vector<1xf32>
    %440 = vector.multi_reduction <add>, %439, %cst_151 [0] : vector<8x1xf32> to vector<1xf32>
    %441 = vector.shape_cast %440 : vector<1xf32> to vector<1x1xf32>
    %cst_152 = arith.constant 8.000000e+00 : f32
    %442 = vector.broadcast %cst_152 : f32 to vector<1x1xf32>
    %443 = arith.divf %441, %442 : vector<1x1xf32>
    %444 = vector.broadcast %432 : vector<1x1xf32> to vector<8x256xf32>
    %445 = arith.subf %422, %444 : vector<8x256xf32>
    %cst_153 = arith.constant 9.99999974E-6 : f32
    %446 = vector.broadcast %cst_153 : f32 to vector<1x1xf32>
    %447 = arith.addf %443, %446 : vector<1x1xf32>
    %448 = math.rsqrt %447 : vector<1x1xf32>
    %449 = vector.broadcast %448 : vector<1x1xf32> to vector<8x256xf32>
    %450 = arith.mulf %445, %449 : vector<8x256xf32>
    %451 = vector.broadcast %423 : vector<8x1xf32> to vector<8x256xf32>
    %452 = arith.mulf %450, %451 : vector<8x256xf32>
    %453 = vector.broadcast %424 : vector<8x1xf32> to vector<8x256xf32>
    %454 = arith.addf %452, %453 : vector<8x256xf32>
    %c0_154 = arith.constant 0 : index
    %c0_155 = arith.constant 0 : index
    %c0_156 = arith.constant 0 : index
    %455 = vector.load %arg2[%c0_154, %c0_155, %c0_156] : memref<1x8x1xf32, #tpu.memory_space<vmem>>, vector<1x8x1xf32>
    %456 = vector.shape_cast %455 : vector<1x8x1xf32> to vector<8x1xf32>
    %457 = vector.broadcast %456 : vector<8x1xf32> to vector<8x256xf32>
    %458 = arith.addf %454, %457 : vector<8x256xf32>
    %c0_157 = arith.constant 0 : index
    %c0_158 = arith.constant 0 : index
    %c0_159 = arith.constant 0 : index
    %459 = vector.load %arg15[%c0_157, %c0_158, %c0_159] : memref<1x8x256xf32, #tpu.memory_space<vmem>>, vector<1x8x256xf32>
    %460 = vector.shape_cast %459 : vector<1x8x256xf32> to vector<8x256xf32>
    %461 = vector.shape_cast %458 : vector<8x256xf32> to vector<1x8x256xf32>
    tpu.vector_store %arg15[%c0_157, %c0_158, %c0_159], %461 {strides = array<i32>} : memref<1x8x256xf32, #tpu.memory_space<vmem>>, vector<1x8x256xf32>,
    return
  }
  func.func @transform_0(%arg0: i32) -> (i32, i32, i32) {
    %c0_i32 = arith.constant 0 : i32
    %c0_i32_0 = arith.constant 0 : i32
    %c0_i32_1 = arith.constant 0 : i32
    return %arg0, %c0_i32, %c0_i32_0 : i32, i32, i32
  }
  func.func @transform_1(%arg0: i32) -> (i32, i32, i32) {
    %c0_i32 = arith.constant 0 : i32
    %c0_i32_0 = arith.constant 0 : i32
    %c0_i32_1 = arith.constant 0 : i32
    return %arg0, %c0_i32, %c0_i32_0 : i32, i32, i32
  }
  func.func @transform_2(%arg0: i32) -> (i32, i32) {
    %c0_i32 = arith.constant 0 : i32
    %c0_i32_0 = arith.constant 0 : i32
    %c0_i32_1 = arith.constant 0 : i32
    return %c0_i32, %c0_i32_0 : i32, i32
  }
  func.func @transform_3(%arg0: i32) -> (i32, i32) {
    %c0_i32 = arith.constant 0 : i32
    %c0_i32_0 = arith.constant 0 : i32
    %c0_i32_1 = arith.constant 0 : i32
    return %c0_i32, %c0_i32_0 : i32, i32
  }
  func.func @transform_4(%arg0: i32) -> (i32, i32) {
    %c0_i32 = arith.constant 0 : i32
    %c0_i32_0 = arith.constant 0 : i32
    %c0_i32_1 = arith.constant 0 : i32
    return %c0_i32, %c0_i32_0 : i32, i32
  }
  func.func @transform_5(%arg0: i32) -> (i32, i32) {
    %c0_i32 = arith.constant 0 : i32
    %c0_i32_0 = arith.constant 0 : i32
    %c0_i32_1 = arith.constant 0 : i32
    return %c0_i32, %c0_i32_0 : i32, i32
  }
  func.func @transform_6(%arg0: i32) -> (i32, i32) {
    %c0_i32 = arith.constant 0 : i32
    %c0_i32_0 = arith.constant 0 : i32
    %c0_i32_1 = arith.constant 0 : i32
    return %c0_i32, %c0_i32_0 : i32, i32
  }
  func.func @transform_7(%arg0: i32) -> (i32, i32) {
    %c0_i32 = arith.constant 0 : i32
    %c0_i32_0 = arith.constant 0 : i32
    %c0_i32_1 = arith.constant 0 : i32
    return %c0_i32, %c0_i32_0 : i32, i32
  }
  func.func @transform_8(%arg0: i32) -> (i32, i32) {
    %c0_i32 = arith.constant 0 : i32
    %c0_i32_0 = arith.constant 0 : i32
    %c0_i32_1 = arith.constant 0 : i32
    return %c0_i32, %c0_i32_0 : i32, i32
  }
  func.func @transform_9(%arg0: i32) -> (i32, i32) {
    %c0_i32 = arith.constant 0 : i32
    %c0_i32_0 = arith.constant 0 : i32
    %c0_i32_1 = arith.constant 0 : i32
    return %c0_i32, %c0_i32_0 : i32, i32
  }
  func.func @transform_10(%arg0: i32) -> (i32, i32) {
    %c0_i32 = arith.constant 0 : i32
    %c0_i32_0 = arith.constant 0 : i32
    %c0_i32_1 = arith.constant 0 : i32
    return %c0_i32, %c0_i32_0 : i32, i32
  }
  func.func @transform_11(%arg0: i32) -> (i32, i32) {
    %c0_i32 = arith.constant 0 : i32
    %c0_i32_0 = arith.constant 0 : i32
    %c0_i32_1 = arith.constant 0 : i32
    return %c0_i32, %c0_i32_0 : i32, i32
  }
  func.func @transform_12(%arg0: i32) -> (i32, i32) {
    %c0_i32 = arith.constant 0 : i32
    %c0_i32_0 = arith.constant 0 : i32
    %c0_i32_1 = arith.constant 0 : i32
    return %c0_i32, %c0_i32_0 : i32, i32
  }
  func.func @transform_13(%arg0: i32) -> (i32, i32) {
    %c0_i32 = arith.constant 0 : i32
    %c0_i32_0 = arith.constant 0 : i32
    %c0_i32_1 = arith.constant 0 : i32
    return %c0_i32, %c0_i32_0 : i32, i32
  }
  func.func @transform_14(%arg0: i32) -> (i32, i32, i32) {
    %c0_i32 = arith.constant 0 : i32
    %c0_i32_0 = arith.constant 0 : i32
    %c0_i32_1 = arith.constant 0 : i32
    return %arg0, %c0_i32, %c0_i32_0 : i32, i32, i32
  }
}

</mosaic_0001>

<llo_original>
// kernel: tpu_custom_call.1
$region0: #{tpu_custom_call.1}
  #allocation0 [shape = 'u32[]', space=smem, size = 0x4, offset = 0x4, fixed_abs, tag = 'smem constant byte address 0x4 - core index']
  #allocation1 [shape = 'u32[144,128]{1,0:T(1,128)}', space=vmem, size = 0x12000, scoped, tag = 'internal scratch']
  %s0 = inlined_call_operand.vmem [shape: f32[2,8,256], index: 0, kind: input, shape index: {}]
  %s1 = inlined_call_operand.vmem [shape: f32[2,8,1], index: 1, kind: input, shape index: {}]
  %s2 = inlined_call_operand.vmem [shape: f32[8,72], index: 2, kind: input, shape index: {}]
  %s3 = inlined_call_operand.vmem [shape: f32[8,1], index: 3, kind: input, shape index: {}]
  %s4 = inlined_call_operand.vmem [shape: f32[8,1], index: 4, kind: input, shape index: {}]
  %s5 = inlined_call_operand.vmem [shape: f32[8,72], index: 5, kind: input, shape index: {}]
  %s6 = inlined_call_operand.vmem [shape: f32[8,1], index: 6, kind: input, shape index: {}]
  %s7 = inlined_call_operand.vmem [shape: f32[8,1], index: 7, kind: input, shape index: {}]
  %s8 = inlined_call_operand.vmem [shape: f32[8,72], index: 8, kind: input, shape index: {}]
  %s9 = inlined_call_operand.vmem [shape: f32[8,1], index: 9, kind: input, shape index: {}]
  %s10 = inlined_call_operand.vmem [shape: f32[8,1], index: 10, kind: input, shape index: {}]
  %s11 = inlined_call_operand.vmem [shape: f32[8,72], index: 11, kind: input, shape index: {}]
  %s12 = inlined_call_operand.vmem [shape: f32[8,1], index: 12, kind: input, shape index: {}]
  %s13 = inlined_call_operand.vmem [shape: f32[8,1], index: 13, kind: input, shape index: {}]
  %s14 = inlined_call_operand.hbm [shape: f32[2,8,256], index: 14, kind: output, shape index: {}]
  %s15 = sld [smem:[#allocation0]]
  $region89: #{tpu_custom_call.1} parent=0
    _
  %s17 = ssub.s32 1, %s15
  %s18 = scalar_select 0, %s17, %s15
  $region1: #{tpu_custom_call.1} parent=0
    #allocation2 [shape = 'u8[16384]{0}', space=vmem, size = 0x4000, scoped, tag = 'output window, operand 0']
    #allocation3 [shape = 's32[2]{0}', space=sflag, size = 0x8, scoped, tag = 'scoped memory for tpu_custom_call.1']
    %19 = vsyncpa [#allocation3], 0
    %s20 = scalar_lea.sflag [#allocation3], 1
    %21 = vsyncpa %s20, 0
    loop: start=0, step=1, limit=4
    $region2: #{tpu_custom_call.1} parent=1 // loop_pre_header
      _
    $region3: #{tpu_custom_call.1} parent=1 // loop_header
      %s23 = sphi 0, %s27
      %p24 = scmp.ge.s32.totalorder %s23, 4
      %s33 = sphi 0, %s35
      %s36 = sphi 0, %s33
      %s37 = sphi 0, %s36
      %s53 = sphi 0, %s37
      %s59 = sphi 0, %s61
      %s62 = sphi 0, %s59
      %s63 = sphi 0, %s62
      %s79 = sphi 0, %s63
      %s83 = sphi 0, %s83
      %s85 = sphi 0, %s83
      %s86 = sphi 0, %s85
      %s100 = sphi 0, %s86
      %s104 = sphi 0, %s104
      %s106 = sphi 0, %s104
      %s107 = sphi 0, %s106
      %s121 = sphi 0, %s107
      %s125 = sphi 0, %s125
      %s127 = sphi 0, %s125
      %s128 = sphi 0, %s127
      %s142 = sphi 0, %s128
      %s146 = sphi 0, %s146
      %s148 = sphi 0, %s146
      %s149 = sphi 0, %s148
      %s163 = sphi 0, %s149
      %s167 = sphi 0, %s167
      %s169 = sphi 0, %s167
      %s170 = sphi 0, %s169
      %s184 = sphi 0, %s170
      %s188 = sphi 0, %s188
      %s190 = sphi 0, %s188
      %s191 = sphi 0, %s190
      %s205 = sphi 0, %s191
      %s209 = sphi 0, %s209
      %s211 = sphi 0, %s209
      %s212 = sphi 0, %s211
      %s226 = sphi 0, %s212
      %s230 = sphi 0, %s230
      %s232 = sphi 0, %s230
      %s233 = sphi 0, %s232
      %s247 = sphi 0, %s233
      %s251 = sphi 0, %s251
      %s253 = sphi 0, %s251
      %s254 = sphi 0, %s253
      %s268 = sphi 0, %s254
      %s272 = sphi 0, %s272
      %s274 = sphi 0, %s272
      %s275 = sphi 0, %s274
      %s289 = sphi 0, %s275
      %s293 = sphi 0, %s293
      %s295 = sphi 0, %s293
      %s296 = sphi 0, %s295
      %s310 = sphi 0, %s296
      %s314 = sphi 0, %s314
      %s316 = sphi 0, %s314
      %s317 = sphi 0, %s316
      %s331 = sphi 0, %s317
      %s337 = sphi 0, %s339
      %s340 = sphi 0, %s337
      %s341 = sphi 0, %s340
      %s357 = sphi 0, %s341
    $region4: #{tpu_custom_call.1} parent=1 // loop_header_branch
      %26 = sbr.rel (%p24) target = $region8
    $region5: #{tpu_custom_call.1} parent=1 // loop_body
      %s28 = ssub.s32 %s23, 1
      %s29 = ssub.s32 %s23, 2
      %s30 = sadd.s32 %s23, 1
      %s31 = ssub.s32 %s23, %s30
      %p32 = scmp.eq.s32.totalorder %s31, 0
      %s34 = sadd.s32 %s33, 1
      %s35 = scalar_select %p32, %s33, %s34
      %p38 = pneg %p32
      %p39 = scmp.eq.s32.totalorder %s23, 1
      %p40 = por %p38, %p39
      %p41 = scmp.ne.s32.totalorder %s33, %s36
      %p42 = scmp.eq.s32.totalorder %s23, 0
      %p43 = por %p41, %p42
      %p44 = scmp.ne.s32.totalorder %s33, %s36
      %p45 = scmp.eq.s32.totalorder %s28, 1
      %p46 = por %p44, %p45
      %p47 = scmp.ne.s32.totalorder %s36, %s37
      %p48 = scmp.eq.s32.totalorder %s28, 0
      %p49 = por %p47, %p48
      %p50 = scmp.ne.s32.totalorder %s36, %s37
      %p51 = scmp.eq.s32.totalorder %s29, 1
      %p52 = por %p50, %p51
      %p54 = scmp.ne.s32.totalorder %s37, %s53
      %p55 = scmp.eq.s32.totalorder %s29, 0
      %p56 = por %p54, %p55
      %s57 = ssub.s32 %s23, %s30
      %p58 = scmp.eq.s32.totalorder %s57, 0
      %s60 = sadd.s32 %s59, 1
      %s61 = scalar_select %p58, %s59, %s60
      %p64 = pneg %p58
      %p65 = scmp.eq.s32.totalorder %s23, 1
      %p66 = por %p64, %p65
      %p67 = scmp.ne.s32.totalorder %s59, %s62
      %p68 = scmp.eq.s32.totalorder %s23, 0
      %p69 = por %p67, %p68
      %p70 = scmp.ne.s32.totalorder %s59, %s62
      %p71 = scmp.eq.s32.totalorder %s28, 1
      %p72 = por %p70, %p71
      %p73 = scmp.ne.s32.totalorder %s62, %s63
      %p74 = scmp.eq.s32.totalorder %s28, 0
      %p75 = por %p73, %p74
      %p76 = scmp.ne.s32.totalorder %s62, %s63
      %p77 = scmp.eq.s32.totalorder %s29, 1
      %p78 = por %p76, %p77
      %p80 = scmp.ne.s32.totalorder %s63, %s79
      %p81 = scmp.eq.s32.totalorder %s29, 0
      %p82 = por %p80, %p81
      %s84 = sadd.s32 %s83, 1
      %p87 = scmp.eq.s32.totalorder %s23, 1
      %p88 = scmp.ne.s32.totalorder %s83, %s85
      %p89 = scmp.eq.s32.totalorder %s23, 0
      %p90 = por %p88, %p89
      %p91 = scmp.ne.s32.totalorder %s83, %s85
      %p92 = scmp.eq.s32.totalorder %s28, 1
      %p93 = por %p91, %p92
      %p94 = scmp.ne.s32.totalorder %s85, %s86
      %p95 = scmp.eq.s32.totalorder %s28, 0
      %p96 = por %p94, %p95
      %p97 = scmp.ne.s32.totalorder %s85, %s86
      %p98 = scmp.eq.s32.totalorder %s29, 1
      %p99 = por %p97, %p98
      %p101 = scmp.ne.s32.totalorder %s86, %s100
      %p102 = scmp.eq.s32.totalorder %s29, 0
      %p103 = por %p101, %p102
      %s105 = sadd.s32 %s104, 1
      %p108 = scmp.eq.s32.totalorder %s23, 1
      %p109 = scmp.ne.s32.totalorder %s104, %s106
      %p110 = scmp.eq.s32.totalorder %s23, 0
      %p111 = por %p109, %p110
      %p112 = scmp.ne.s32.totalorder %s104, %s106
      %p113 = scmp.eq.s32.totalorder %s28, 1
      %p114 = por %p112, %p113
      %p115 = scmp.ne.s32.totalorder %s106, %s107
      %p116 = scmp.eq.s32.totalorder %s28, 0
      %p117 = por %p115, %p116
      %p118 = scmp.ne.s32.totalorder %s106, %s107
      %p119 = scmp.eq.s32.totalorder %s29, 1
      %p120 = por %p118, %p119
      %p122 = scmp.ne.s32.totalorder %s107, %s121
      %p123 = scmp.eq.s32.totalorder %s29, 0
      %p124 = por %p122, %p123
      %s126 = sadd.s32 %s125, 1
      %p129 = scmp.eq.s32.totalorder %s23, 1
      %p130 = scmp.ne.s32.totalorder %s125, %s127
      %p131 = scmp.eq.s32.totalorder %s23, 0
      %p132 = por %p130, %p131
      %p133 = scmp.ne.s32.totalorder %s125, %s127
      %p134 = scmp.eq.s32.totalorder %s28, 1
      %p135 = por %p133, %p134
      %p136 = scmp.ne.s32.totalorder %s127, %s128
      %p137 = scmp.eq.s32.totalorder %s28, 0
      %p138 = por %p136, %p137
      %p139 = scmp.ne.s32.totalorder %s127, %s128
      %p140 = scmp.eq.s32.totalorder %s29, 1
      %p141 = por %p139, %p140
      %p143 = scmp.ne.s32.totalorder %s128, %s142
      %p144 = scmp.eq.s32.totalorder %s29, 0
      %p145 = por %p143, %p144
      %s147 = sadd.s32 %s146, 1
      %p150 = scmp.eq.s32.totalorder %s23, 1
      %p151 = scmp.ne.s32.totalorder %s146, %s148
      %p152 = scmp.eq.s32.totalorder %s23, 0
      %p153 = por %p151, %p152
      %p154 = scmp.ne.s32.totalorder %s146, %s148
      %p155 = scmp.eq.s32.totalorder %s28, 1
      %p156 = por %p154, %p155
      %p157 = scmp.ne.s32.totalorder %s148, %s149
      %p158 = scmp.eq.s32.totalorder %s28, 0
      %p159 = por %p157, %p158
      %p160 = scmp.ne.s32.totalorder %s148, %s149
      %p161 = scmp.eq.s32.totalorder %s29, 1
      %p162 = por %p160, %p161
      %p164 = scmp.ne.s32.totalorder %s149, %s163
      %p165 = scmp.eq.s32.totalorder %s29, 0
      %p166 = por %p164, %p165
      %s168 = sadd.s32 %s167, 1
      %p171 = scmp.eq.s32.totalorder %s23, 1
      %p172 = scmp.ne.s32.totalorder %s167, %s169
      %p173 = scmp.eq.s32.totalorder %s23, 0
      %p174 = por %p172, %p173
      %p175 = scmp.ne.s32.totalorder %s167, %s169
      %p176 = scmp.eq.s32.totalorder %s28, 1
      %p177 = por %p175, %p176
      %p178 = scmp.ne.s32.totalorder %s169, %s170
      %p179 = scmp.eq.s32.totalorder %s28, 0
      %p180 = por %p178, %p179
      %p181 = scmp.ne.s32.totalorder %s169, %s170
      %p182 = scmp.eq.s32.totalorder %s29, 1
      %p183 = por %p181, %p182
      %p185 = scmp.ne.s32.totalorder %s170, %s184
      %p186 = scmp.eq.s32.totalorder %s29, 0
      %p187 = por %p185, %p186
      %s189 = sadd.s32 %s188, 1
      %p192 = scmp.eq.s32.totalorder %s23, 1
      %p193 = scmp.ne.s32.totalorder %s188, %s190
      %p194 = scmp.eq.s32.totalorder %s23, 0
      %p195 = por %p193, %p194
      %p196 = scmp.ne.s32.totalorder %s188, %s190
      %p197 = scmp.eq.s32.totalorder %s28, 1
      %p198 = por %p196, %p197
      %p199 = scmp.ne.s32.totalorder %s190, %s191
      %p200 = scmp.eq.s32.totalorder %s28, 0
      %p201 = por %p199, %p200
      %p202 = scmp.ne.s32.totalorder %s190, %s191
      %p203 = scmp.eq.s32.totalorder %s29, 1
      %p204 = por %p202, %p203
      %p206 = scmp.ne.s32.totalorder %s191, %s205
      %p207 = scmp.eq.s32.totalorder %s29, 0
      %p208 = por %p206, %p207
      %s210 = sadd.s32 %s209, 1
      %p213 = scmp.eq.s32.totalorder %s23, 1
      %p214 = scmp.ne.s32.totalorder %s209, %s211
      %p215 = scmp.eq.s32.totalorder %s23, 0
      %p216 = por %p214, %p215
      %p217 = scmp.ne.s32.totalorder %s209, %s211
      %p218 = scmp.eq.s32.totalorder %s28, 1
      %p219 = por %p217, %p218
      %p220 = scmp.ne.s32.totalorder %s211, %s212
      %p221 = scmp.eq.s32.totalorder %s28, 0
      %p222 = por %p220, %p221
      %p223 = scmp.ne.s32.totalorder %s211, %s212
      %p224 = scmp.eq.s32.totalorder %s29, 1
      %p225 = por %p223, %p224
      %p227 = scmp.ne.s32.totalorder %s212, %s226
      %p228 = scmp.eq.s32.totalorder %s29, 0
      %p229 = por %p227, %p228
      %s231 = sadd.s32 %s230, 1
      %p234 = scmp.eq.s32.totalorder %s23, 1
      %p235 = scmp.ne.s32.totalorder %s230, %s232
      %p236 = scmp.eq.s32.totalorder %s23, 0
      %p237 = por %p235, %p236
      %p238 = scmp.ne.s32.totalorder %s230, %s232
      %p239 = scmp.eq.s32.totalorder %s28, 1
      %p240 = por %p238, %p239
      %p241 = scmp.ne.s32.totalorder %s232, %s233
      %p242 = scmp.eq.s32.totalorder %s28, 0
      %p243 = por %p241, %p242
      %p244 = scmp.ne.s32.totalorder %s232, %s233
      %p245 = scmp.eq.s32.totalorder %s29, 1
      %p246 = por %p244, %p245
      %p248 = scmp.ne.s32.totalorder %s233, %s247
      %p249 = scmp.eq.s32.totalorder %s29, 0
      %p250 = por %p248, %p249
      %s252 = sadd.s32 %s251, 1
      %p255 = scmp.eq.s32.totalorder %s23, 1
      %p256 = scmp.ne.s32.totalorder %s251, %s253
      %p257 = scmp.eq.s32.totalorder %s23, 0
      %p258 = por %p256, %p257
      %p259 = scmp.ne.s32.totalorder %s251, %s253
      %p260 = scmp.eq.s32.totalorder %s28, 1
      %p261 = por %p259, %p260
      %p262 = scmp.ne.s32.totalorder %s253, %s254
      %p263 = scmp.eq.s32.totalorder %s28, 0
      %p264 = por %p262, %p263
      %p265 = scmp.ne.s32.totalorder %s253, %s254
      %p266 = scmp.eq.s32.totalorder %s29, 1
      %p267 = por %p265, %p266
      %p269 = scmp.ne.s32.totalorder %s254, %s268
      %p270 = scmp.eq.s32.totalorder %s29, 0
      %p271 = por %p269, %p270
      %s273 = sadd.s32 %s272, 1
      %p276 = scmp.eq.s32.totalorder %s23, 1
      %p277 = scmp.ne.s32.totalorder %s272, %s274
      %p278 = scmp.eq.s32.totalorder %s23, 0
      %p279 = por %p277, %p278
      %p280 = scmp.ne.s32.totalorder %s272, %s274
      %p281 = scmp.eq.s32.totalorder %s28, 1
      %p282 = por %p280, %p281
      %p283 = scmp.ne.s32.totalorder %s274, %s275
      %p284 = scmp.eq.s32.totalorder %s28, 0
      %p285 = por %p283, %p284
      %p286 = scmp.ne.s32.totalorder %s274, %s275
      %p287 = scmp.eq.s32.totalorder %s29, 1
      %p288 = por %p286, %p287
      %p290 = scmp.ne.s32.totalorder %s275, %s289
      %p291 = scmp.eq.s32.totalorder %s29, 0
      %p292 = por %p290, %p291
      %s294 = sadd.s32 %s293, 1
      %p297 = scmp.eq.s32.totalorder %s23, 1
      %p298 = scmp.ne.s32.totalorder %s293, %s295
      %p299 = scmp.eq.s32.totalorder %s23, 0
      %p300 = por %p298, %p299
      %p301 = scmp.ne.s32.totalorder %s293, %s295
      %p302 = scmp.eq.s32.totalorder %s28, 1
      %p303 = por %p301, %p302
      %p304 = scmp.ne.s32.totalorder %s295, %s296
      %p305 = scmp.eq.s32.totalorder %s28, 0
      %p306 = por %p304, %p305
      %p307 = scmp.ne.s32.totalorder %s295, %s296
      %p308 = scmp.eq.s32.totalorder %s29, 1
      %p309 = por %p307, %p308
      %p311 = scmp.ne.s32.totalorder %s296, %s310
      %p312 = scmp.eq.s32.totalorder %s29, 0
      %p313 = por %p311, %p312
      %s315 = sadd.s32 %s314, 1
      %p318 = scmp.eq.s32.totalorder %s23, 1
      %p319 = scmp.ne.s32.totalorder %s314, %s316
      %p320 = scmp.eq.s32.totalorder %s23, 0
      %p321 = por %p319, %p320
      %p322 = scmp.ne.s32.totalorder %s314, %s316
      %p323 = scmp.eq.s32.totalorder %s28, 1
      %p324 = por %p322, %p323
      %p325 = scmp.ne.s32.totalorder %s316, %s317
      %p326 = scmp.eq.s32.totalorder %s28, 0
      %p327 = por %p325, %p326
      %p328 = scmp.ne.s32.totalorder %s316, %s317
      %p329 = scmp.eq.s32.totalorder %s29, 1
      %p330 = por %p328, %p329
      %p332 = scmp.ne.s32.totalorder %s317, %s331
      %p333 = scmp.eq.s32.totalorder %s29, 0
      %p334 = por %p332, %p333
      %s335 = ssub.s32 %s23, %s30
      %p336 = scmp.eq.s32.totalorder %s335, 0
      %s338 = sadd.s32 %s337, 1
      %s339 = scalar_select %p336, %s337, %s338
      %p342 = pneg %p336
      %p343 = scmp.eq.s32.totalorder %s23, 1
      %p344 = por %p342, %p343
      %p345 = scmp.ne.s32.totalorder %s337, %s340
      %p346 = scmp.eq.s32.totalorder %s23, 0
      %p347 = por %p345, %p346
      %p348 = scmp.ne.s32.totalorder %s337, %s340
      %p349 = scmp.eq.s32.totalorder %s28, 1
      %p350 = por %p348, %p349
      %p351 = scmp.ne.s32.totalorder %s340, %s341
      %p352 = scmp.eq.s32.totalorder %s28, 0
      %p353 = por %p351, %p352
      %p354 = scmp.ne.s32.totalorder %s340, %s341
      %p355 = scmp.eq.s32.totalorder %s29, 1
      %p356 = por %p354, %p355
      %p358 = scmp.ne.s32.totalorder %s341, %s357
      %p359 = scmp.eq.s32.totalorder %s29, 0
      %p360 = por %p358, %p359
      %p361 = scmp.le.s32.totalorder 1, %s23
      %p362 = scmp.lt.s32.totalorder %s23, 3
      %p363 = pnand %p361, %p362
      %p364 = pneg %p363
      // Predicated region
      $region9: #{tpu_custom_call.1} parent=5 // pred_check
        _
      $region10: #{tpu_custom_call.1} parent=5 // pred_check_branch
        %366 = sbr.rel (%p363) target = $region12
      $region11: #{tpu_custom_call.1} parent=5 // pred_region
        %s367 = ssub.s32 %s23, 1
        // Predicated region
        $region13: #{tpu_custom_call.1} parent=11 // pred_check
          %p368 = pneg %p96
        $region14: #{tpu_custom_call.1} parent=11 // pred_check_branch
          %370 = sbr.rel (%p368) target = $region16
        $region15: #{tpu_custom_call.1} parent=11 // pred_region
          _
        $region16: #{tpu_custom_call.1} parent=11 // pred_fallthru
          _
        // Predicated region
        $region17: #{tpu_custom_call.1} parent=11 // pred_check
          %p371 = pneg %p117
        $region18: #{tpu_custom_call.1} parent=11 // pred_check_branch
          %373 = sbr.rel (%p371) target = $region20
        $region19: #{tpu_custom_call.1} parent=11 // pred_region
          _
        $region20: #{tpu_custom_call.1} parent=11 // pred_fallthru
          _
        // Predicated region
        $region21: #{tpu_custom_call.1} parent=11 // pred_check
          %p374 = pneg %p138
        $region22: #{tpu_custom_call.1} parent=11 // pred_check_branch
          %376 = sbr.rel (%p374) target = $region24
        $region23: #{tpu_custom_call.1} parent=11 // pred_region
          _
        $region24: #{tpu_custom_call.1} parent=11 // pred_fallthru
          _
        // Predicated region
        $region25: #{tpu_custom_call.1} parent=11 // pred_check
          %p377 = pneg %p159
        $region26: #{tpu_custom_call.1} parent=11 // pred_check_branch
          %379 = sbr.rel (%p377) target = $region28
        $region27: #{tpu_custom_call.1} parent=11 // pred_region
          _
        $region28: #{tpu_custom_call.1} parent=11 // pred_fallthru
          _
        // Predicated region
        $region29: #{tpu_custom_call.1} parent=11 // pred_check
          %p380 = pneg %p180
        $region30: #{tpu_custom_call.1} parent=11 // pred_check_branch
          %382 = sbr.rel (%p380) target = $region32
        $region31: #{tpu_custom_call.1} parent=11 // pred_region
          _
        $region32: #{tpu_custom_call.1} parent=11 // pred_fallthru
          _
        // Predicated region
        $region33: #{tpu_custom_call.1} parent=11 // pred_check
          %p383 = pneg %p201
        $region34: #{tpu_custom_call.1} parent=11 // pred_check_branch
          %385 = sbr.rel (%p383) target = $region36
        $region35: #{tpu_custom_call.1} parent=11 // pred_region
          _
        $region36: #{tpu_custom_call.1} parent=11 // pred_fallthru
          _
        // Predicated region
        $region37: #{tpu_custom_call.1} parent=11 // pred_check
          %p386 = pneg %p222
        $region38: #{tpu_custom_call.1} parent=11 // pred_check_branch
          %388 = sbr.rel (%p386) target = $region40
        $region39: #{tpu_custom_call.1} parent=11 // pred_region
          _
        $region40: #{tpu_custom_call.1} parent=11 // pred_fallthru
          _
        // Predicated region
        $region41: #{tpu_custom_call.1} parent=11 // pred_check
          %p389 = pneg %p243
        $region42: #{tpu_custom_call.1} parent=11 // pred_check_branch
          %391 = sbr.rel (%p389) target = $region44
        $region43: #{tpu_custom_call.1} parent=11 // pred_region
          _
        $region44: #{tpu_custom_call.1} parent=11 // pred_fallthru
          _
        // Predicated region
        $region45: #{tpu_custom_call.1} parent=11 // pred_check
          %p392 = pneg %p264
        $region46: #{tpu_custom_call.1} parent=11 // pred_check_branch
          %394 = sbr.rel (%p392) target = $region48
        $region47: #{tpu_custom_call.1} parent=11 // pred_region
          _
        $region48: #{tpu_custom_call.1} parent=11 // pred_fallthru
          _
        // Predicated region
        $region49: #{tpu_custom_call.1} parent=11 // pred_check
          %p395 = pneg %p285
        $region50: #{tpu_custom_call.1} parent=11 // pred_check_branch
          %397 = sbr.rel (%p395) target = $region52
        $region51: #{tpu_custom_call.1} parent=11 // pred_region
          _
        $region52: #{tpu_custom_call.1} parent=11 // pred_fallthru
          _
        // Predicated region
        $region53: #{tpu_custom_call.1} parent=11 // pred_check
          %p398 = pneg %p306
        $region54: #{tpu_custom_call.1} parent=11 // pred_check_branch
          %400 = sbr.rel (%p398) target = $region56
        $region55: #{tpu_custom_call.1} parent=11 // pred_region
          _
        $region56: #{tpu_custom_call.1} parent=11 // pred_fallthru
          _
        // Predicated region
        $region57: #{tpu_custom_call.1} parent=11 // pred_check
          %p401 = pneg %p327
        $region58: #{tpu_custom_call.1} parent=11 // pred_check_branch
          %403 = sbr.rel (%p401) target = $region60
        $region59: #{tpu_custom_call.1} parent=11 // pred_region
          _
        $region60: #{tpu_custom_call.1} parent=11 // pred_fallthru
          _
      $region12: #{tpu_custom_call.1} parent=5 // pred_fallthru
        _
      %p404 = scmp.lt.s32.totalorder %s23, 2
      // Predicated region
      $region61: #{tpu_custom_call.1} parent=5 // pred_check
        %p405 = pneg %p404
      $region62: #{tpu_custom_call.1} parent=5 // pred_check_branch
        %407 = sbr.rel (%p405) target = $region64
      $region63: #{tpu_custom_call.1} parent=5 // pred_region
        // Predicated region
        $region65: #{tpu_custom_call.1} parent=63 // pred_check
          %p408 = pneg %p43
        $region66: #{tpu_custom_call.1} parent=63 // pred_check_branch
          %410 = sbr.rel (%p408) target = $region68
        $region67: #{tpu_custom_call.1} parent=63 // pred_region
          %p411 = scmp.lt.s32.totalorder %s23, 1
          %s412 = scalar_select %p411, %s23, 1
          %s413 = smul.addr %s412, 2
          %s414 = smul.addr %s413, 8
          %s415 = scalar_lea.vmem %s0, %s414
        $region68: #{tpu_custom_call.1} parent=63 // pred_fallthru
          _
        // Predicated region
        $region69: #{tpu_custom_call.1} parent=63 // pred_check
          %p416 = pneg %p69
        $region70: #{tpu_custom_call.1} parent=63 // pred_check_branch
          %418 = sbr.rel (%p416) target = $region72
        $region71: #{tpu_custom_call.1} parent=63 // pred_region
          %p419 = scmp.lt.s32.totalorder %s23, 1
          %s420 = scalar_select %p419, %s23, 1
          %s421 = smul.addr %s420, 8
          %s422 = scalar_lea.vmem %s1, %s421
        $region72: #{tpu_custom_call.1} parent=63 // pred_fallthru
          _
      $region64: #{tpu_custom_call.1} parent=5 // pred_fallthru
        _
      %p423 = scmp.le.s32.totalorder 1, %s23
      %p424 = scmp.lt.s32.totalorder %s23, 3
      %p425 = pnand %p423, %p424
      %p426 = pneg %p425
      // Predicated region
      $region73: #{tpu_custom_call.1} parent=5 // pred_check
        _
      $region74: #{tpu_custom_call.1} parent=5 // pred_check_branch
        %428 = sbr.rel (%p425) target = $region76
      $region75: #{tpu_custom_call.1} parent=5 // pred_region
        %s429 = ssub.s32 %s23, 1
        %p430 = scmp.lt.s32.totalorder %s28, 1
        %s431 = scalar_select %p430, %s28, 1
        %s432 = smul.addr %s431, 2
        %s433 = smul.addr %s432, 8
        %s434 = scalar_lea.vmem %s0, %s433
        %p435 = pneg %p49
        %p436 = pneg %p46
        %p437 = scmp.lt.s32.totalorder %s28, 1
        %s438 = scalar_select %p437, %s28, 1
        %s439 = smul.addr %s438, 8
        %s440 = scalar_lea.vmem %s1, %s439
        %p441 = pneg %p75
        %p442 = pneg %p72
        %p443 = pneg %p96
        %p444 = pneg %p93
        %p445 = pneg %p117
        %p446 = pneg %p114
        %p447 = pneg %p138
        %p448 = pneg %p135
        %p449 = pneg %p159
        %p450 = pneg %p156
        %p451 = pneg %p180
        %p452 = pneg %p177
        %p453 = pneg %p201
        %p454 = pneg %p198
        %p455 = pneg %p222
        %p456 = pneg %p219
        %p457 = pneg %p243
        %p458 = pneg %p240
        %p459 = pneg %p264
        %p460 = pneg %p261
        %p461 = pneg %p285
        %p462 = pneg %p282
        %p463 = pneg %p306
        %p464 = pneg %p303
        %p465 = pneg %p327
        %p466 = pneg %p324
        %p467 = pneg %p353
        %p468 = pneg %p350
        %s469 = sand.u32 %s340, 1
        %s470 = scalar_lea.sflag [#allocation3], %s469
        %s471 = sand.u32 %s340, 1
        %s472 = smul.addr %s471, 16
        %s473 = scalar_lea.vmem [#allocation2], %s472
        %p474 = scmp.lt.s32.totalorder %s28, 1
        %s475 = scalar_select %p474, %s28, 1
        %s476 = smul.addr %s475, 2
        %s477 = smul.addr %s476, 8
        %s478 = scalar_lea.vmem %s0, %s477
        %p479 = scmp.lt.s32.totalorder %s28, 1
        %s480 = scalar_select %p479, %s28, 1
        %s481 = smul.addr %s480, 8
        %s482 = scalar_lea.vmem %s1, %s481
        %v483 = vld [vmem:[%s478] sm:$0xff]
        %v484 = vld [vmem:[%s478 + $0x8] sm:$0xff]
        %v485 = vlaneseq
        %v486 = vand.u32 %v485, 127
        %v487 = vadd.s32 %v486, 128
        %vm488 = vcmp.lt.s32.totalorder %v486, 0
        %v489 = vsub.s32 0, %v486
        %v490 = vsel %vm488, %v489, %v486
        %v491 = vshrl.u32 %v490, 4
        %v492 = vand.u32 %v490, 15
        %v493 = vsub.s32 0, %v492
        %v494 = vsel %vm488, %v493, %v492
        %vm495 = vcmp.lt.s32.totalorder %v487, 0
        %v496 = vsub.s32 0, %v487
        %v497 = vsel %vm495, %v496, %v487
        %v498 = vshrl.u32 %v497, 4
        %v499 = vand.u32 %v497, 15
        %v500 = vsub.s32 0, %v499
        %v501 = vsel %vm495, %v500, %v499
        %vm502 = vcmp.ne.s32.totalorder %v494, 0
        %vm503 = vcmp.ne.s32.totalorder %v501, 0
        %vm504 = vcmp.lt.s32.totalorder %v494, 0
        %vm505 = vcmp.lt.s32.totalorder %v501, 0
        %vm506 = vmand %vm504, %vm502
        %vm507 = vmand %vm505, %vm503
        %v508 = vadd.s32 %v494, 16
        %v509 = vadd.s32 %v501, 16
        %v510 = vsel %vm506, %v508, %v494
        %v511 = vsel %vm507, %v509, %v501
        %vm512 = vcmp.ge.s32.totalorder %v510, 1
        %vm513 = vcmp.ge.s32.totalorder %v511, 1
        %vm514 = vcmp.lt.s32.totalorder %v510, 15
        %vm515 = vcmp.lt.s32.totalorder %v511, 15
        %v516 = vsel %vm512, 1, 0
        %v517 = vsel %vm513, 1, 0
        %vm518 = vcmp.eq.s32.totalorder %v516, 1
        %vm519 = vcmp.eq.s32.totalorder %v517, 1
        %523 = vrot.lane.b32.xlu0 0.0, 17
        %v524 = vpop.permute.xlu0 %523
        %525 = vrot.lane.b32.xlu0 %v483, 17
        %v526 = vpop.permute.xlu0 %525
        %527 = vrot.lane.b32.xlu0 %v484, 17
        %v528 = vpop.permute.xlu0 %527
        %vm529 = vcmask 138240
        %v530 = vsel %vm529, %v524, %v526
        %v531 = vsel %vm529, %v526, %v528
        %v534 = vsel %vm518, %v530, 0.0
        %v535 = vsel %vm519, %v531, 0.0
        %v536 = vsel %vm514, 1, 0
        %v537 = vsel %vm515, 1, 0
        %vm538 = vcmp.eq.s32.totalorder %v536, 1
        %vm539 = vcmp.eq.s32.totalorder %v537, 1
        %540 = vrot.lane.b32.xlu0 0.0, 15
        %v541 = vpop.permute.xlu0 %540
        %542 = vrot.lane.b32.xlu0 %v483, 15
        %v543 = vpop.permute.xlu0 %542
        %544 = vrot.lane.b32.xlu0 %v484, 15
        %v545 = vpop.permute.xlu0 %544
        %vm546 = vcmask 121856
        %v547 = vsel %vm546, %v541, %v543
        %v548 = vsel %vm546, %v543, %v545
        %v551 = vsel %vm538, %v547, 0.0
        %v552 = vsel %vm539, %v548, 0.0
        %553 = vrot.lane.b32.xlu0 0.0, 1
        %v554 = vpop.permute.xlu0 %553
        %555 = vrot.lane.b32.xlu0 %v483, 1
        %v556 = vpop.permute.xlu0 %555
        %557 = vrot.lane.b32.xlu0 %v484, 1
        %v558 = vpop.permute.xlu0 %557
        %vm559 = vcmask 7168
        %v560 = vsel %vm559, %v554, %v556
        %v561 = vsel %vm559, %v556, %v558
        %v564 = vsel %vm518, %v560, 0.0
        %v565 = vsel %vm519, %v561, 0.0
        %566 = vrot.lane.b32.xlu0 %v483, 127
        %v567 = vpop.permute.xlu0 %566
        %568 = vrot.lane.b32.xlu0 %v484, 127
        %v569 = vpop.permute.xlu0 %568
        %570 = vrot.lane.b32.xlu0 0.0, 127
        %v571 = vpop.permute.xlu0 %570
        %vm572 = vcmask 1039360
        %v573 = vsel %vm572, %v567, %v569
        %v574 = vsel %vm572, %v569, %v571
        %v577 = vsel %vm538, %v573, 0.0
        %v578 = vsel %vm539, %v574, 0.0
        %579 = vrot.lane.b32.xlu0 %v483, 113
        %v580 = vpop.permute.xlu0 %579
        %581 = vrot.lane.b32.xlu0 %v484, 113
        %v582 = vpop.permute.xlu0 %581
        %583 = vrot.lane.b32.xlu0 0.0, 113
        %v584 = vpop.permute.xlu0 %583
        %vm585 = vcmask 924672
        %v586 = vsel %vm585, %v580, %v582
        %v587 = vsel %vm585, %v582, %v584
        %v590 = vsel %vm518, %v586, 0.0
        %v591 = vsel %vm519, %v587, 0.0
        %592 = vrot.lane.b32.xlu0 %v483, 111
        %v593 = vpop.permute.xlu0 %592
        %594 = vrot.lane.b32.xlu0 %v484, 111
        %v595 = vpop.permute.xlu0 %594
        %596 = vrot.lane.b32.xlu0 0.0, 111
        %v597 = vpop.permute.xlu0 %596
        %vm598 = vcmask 908288
        %v599 = vsel %vm598, %v593, %v595
        %v600 = vsel %vm598, %v595, %v597
        %v603 = vsel %vm538, %v599, 0.0
        %v604 = vsel %vm539, %v600, 0.0
        %605 = vrot.lane.b32.xlu0 0.0, 16
        %v606 = vpop.permute.xlu0 %605
        %607 = vrot.lane.b32.xlu0 %v483, 16
        %v608 = vpop.permute.xlu0 %607
        %609 = vrot.lane.b32.xlu0 %v484, 16
        %v610 = vpop.permute.xlu0 %609
        %vm611 = vcmask 130048
        %v612 = vsel %vm611, %v606, %v608
        %v613 = vsel %vm611, %v608, %v610
        %616 = vrot.lane.b32.xlu0 %v483, 112
        %v617 = vpop.permute.xlu0 %616
        %618 = vrot.lane.b32.xlu0 %v484, 112
        %v619 = vpop.permute.xlu0 %618
        %620 = vrot.lane.b32.xlu0 0.0, 112
        %v621 = vpop.permute.xlu0 %620
        %vm622 = vcmask 916480
        %v623 = vsel %vm622, %v617, %v619
        %v624 = vsel %vm622, %v619, %v621
        %v627 = vld [vmem:[%s2] sm:$0xff]
        %vm628 = vcmask 588800
        %v630 = vsel %vm628, %v627, 0
        %632 = vmatprep.subr.mxu0 %v535
        %633 = vmatpush1.msra.mxu0 %v534
        %634 = vmatprep.subr.mxu0 %v613
        %635 = vmatpush1.msra.mxu0 %v612
        %636 = vmatprep.subr.mxu0 %v552
        %637 = vmatpush1.msra.mxu0 %v551
        %638 = vmatprep.subr.mxu0 %v565
        %639 = vmatpush1.msra.mxu0 %v564
        %640 = vmatprep.subr.mxu0 %v484
        %641 = vmatpush1.msra.mxu0 %v483
        %642 = vmatprep.subr.mxu0 %v578
        %643 = vmatpush1.msra.mxu0 %v577
        %644 = vmatprep.subr.mxu0 %v591
        %645 = vmatpush1.msra.mxu0 %v590
        %646 = vmatprep.subr.mxu0 %v624
        %647 = vmatpush1.msra.mxu0 %v623
        %648 = vmatprep.subr.mxu0 %v604
        %649 = vmatpush1.msra.mxu0 %v603
        %650 = vmatprep.subr.mxu0 0.0
        %651 = vmatpush1.msra.mxu0 0.0
        %652 = vmatprep.subr.mxu0 0.0
        %653 = vmatpush1.msra.mxu0 0.0
        %654 = vmatprep.subr.mxu0 0.0
        %655 = vmatpush1.msra.mxu0 0.0
        %656 = vmatprep.subr.mxu0 0.0
        %657 = vmatpush1.msra.mxu0 0.0
        %658 = vmatprep.subr.mxu0 0.0
        %659 = vmatpush1.msra.mxu0 0.0
        %660 = vmatprep.subr.mxu0 0.0
        %661 = vmatpush1.msra.mxu0 0.0
        %662 = vmatprep.subr.mxu0 0.0
        %663 = vmatpush1.msra.mxu0 0.0
        %664 = vmatprep.subr.mxu0 0.0
        %665 = vmatpush1.msra.mxu0 0.0
        %666 = vmatprep.subr.mxu0 0.0
        %667 = vmatpush1.msra.mxu0 0.0
        %668 = vmatprep.subr.mxu0 0.0
        %669 = vmatpush1.msra.mxu0 0.0
        %670 = vmatprep.subr.mxu0 0.0
        %671 = vmatpush1.msra.mxu0 0.0
        %672 = vmatprep.subr.mxu0 0.0
        %673 = vmatpush1.msra.mxu0 0.0
        %674 = vmatprep.subr.mxu0 0.0
        %675 = vmatpush1.msra.mxu0 0.0
        %676 = vmatprep.subr.mxu0 0.0
        %677 = vmatpush1.msra.mxu0 0.0
        %678 = vmatprep.subr.mxu0 0.0
        %679 = vmatpush1.msra.mxu0 0.0
        %680 = vmatprep.subr.mxu0 0.0
        %681 = vmatpush1.msra.mxu0 0.0
        %682 = vmatprep.subr.mxu0 0.0
        %683 = vmatpush1.msra.mxu0 0.0
        %684 = vmatprep.subr.mxu0 0.0
        %685 = vmatpush1.msra.mxu0 0.0
        %686 = vmatprep.subr.mxu0 0.0
        %687 = vmatpush1.msra.mxu0 0.0
        %688 = vmatprep.subr.mxu0 0.0
        %689 = vmatpush1.msra.mxu0 0.0
        %690 = vmatprep.subr.mxu0 0.0
        %691 = vmatpush1.msra.mxu0 0.0
        %692 = vmatprep.subr.mxu0 0.0
        %693 = vmatpush1.msra.mxu0 0.0
        %694 = vmatprep.subr.mxu0 0.0
        %695 = vmatpush1.msra.mxu0 0.0
        %696 = vmatprep.mubr.f32.mxu0 0.0
        %697 = vmatmul.mubr.f32.gmra.mrb[0].mxu0 %v630
        %v698 = vpop.f32.mrb[0].mxu0
        %v699 = vadd.f32 0.0, %v698
        %v700 = vpop.f32.mrb[0].mxu0
        %v701 = vadd.f32 0.0, %v700
        %702 = vdwg.mxu0
        %v703 = vld [vmem:[%s3] sm:$0xff]
        %v704 = vld [vmem:[%s4] sm:$0xff]
        %v705 = vadd.f32 %v699, %v701
        %706 = vadd.xlane.f32.xlu0 %v705
        %v707 = vpop.xlane.xlu0 %706
        %v708 = vrcp.pop 256.0
        %v709 = vmul.f32 %v707, %v708
        %v710 = vrot.slane %v709, 4
        %v711 = vadd.f32 %v709, %v710
        %v712 = vrot.slane %v711, 2
        %v713 = vadd.f32 %v711, %v712
        %v714 = vrot.slane %v713, 1
        %v715 = vadd.f32 %v713, %v714
        %v716 = vrcp.pop 8.0
        %v717 = vmul.f32 %v715, %v716
        %v718 = vsub.f32 %v699, %v717
        %v719 = vsub.f32 %v701, %v717
        %v720 = vmul.f32 %v718, %v718
        %v721 = vmul.f32 %v719, %v719
        %v722 = vadd.f32 %v720, %v721
        %723 = vadd.xlane.f32.xlu0 %v722
        %v724 = vpop.xlane.xlu0 %723
        %v725 = vmul.f32 %v724, %v708
        %v726 = vrot.slane %v725, 4
        %v727 = vadd.f32 %v725, %v726
        %v728 = vrot.slane %v727, 2
        %v729 = vadd.f32 %v727, %v728
        %v730 = vrot.slane %v729, 1
        %v731 = vadd.f32 %v729, %v730
        %v732 = vmul.f32 %v731, %v716
        %v733 = vadd.f32 %v732, 1e-05
        %v734 = vrsqrt.pop %v733
        %v735 = vmul.f32 %v718, %v734
        %v736 = vmul.f32 %v719, %v734
        %738 = vset.pattern.permute.xlu0 0
        %739 = vperm.xlu0 %738, %v703
        %v740 = vpop.permute.xlu0 %739
        %v742 = vmul.f32 %v735, %v740
        %v743 = vmul.f32 %v736, %v740
        %745 = vset.pattern.permute.xlu0 0
        %746 = vperm.xlu0 %745, %v704
        %v747 = vpop.permute.xlu0 %746
        %v749 = vadd.f32 %v742, %v747
        %v750 = vadd.f32 %v743, %v747
        %v751 = vmul.f32 %v749, 0.5
        %v752 = vmul.f32 %v750, 0.5
        %v753 = vmul.f32 %v749, 0.70710677
        %v754 = vmul.f32 %v750, 0.70710677
        %v755 = vmax.f32 %v753, -4.0
        %v756 = vmax.f32 %v754, -4.0
        %v757 = vmin.f32 %v755, 4.0
        %v758 = vmin.f32 %v756, 4.0
        %v759 = vmul.f32 %v757, %v757
        %v760 = vmul.f32 %v758, %v758
        %v761 = vmul.f32 %v759, -2.7261424e-10
        %v762 = vmul.f32 %v760, -2.7261424e-10
        %v763 = vadd.f32 %v761, 2.7706815e-08
        %v764 = vadd.f32 %v762, 2.7706815e-08
        %v765 = vmul.f32 %v763, %v759
        %v766 = vmul.f32 %v764, %v760
        %v767 = vadd.f32 %v765, -2.101024e-06
        %v768 = vadd.f32 %v766, -2.101024e-06
        %v769 = vmul.f32 %v767, %v759
        %v770 = vmul.f32 %v768, %v760
        %v771 = vadd.f32 %v769, -5.6925062e-05
        %v772 = vadd.f32 %v770, -5.6925062e-05
        %v773 = vmul.f32 %v771, %v759
        %v774 = vmul.f32 %v772, %v760
        %v775 = vadd.f32 %v773, -0.00073499064
        %v776 = vadd.f32 %v774, -0.00073499064
        %v777 = vmul.f32 %v775, %v759
        %v778 = vmul.f32 %v776, %v760
        %v779 = vadd.f32 %v777, -0.0029546
        %v780 = vadd.f32 %v778, -0.0029546
        %v781 = vmul.f32 %v779, %v759
        %v782 = vmul.f32 %v780, %v760
        %v783 = vadd.f32 %v781, -0.016096033
        %v784 = vadd.f32 %v782, -0.016096033
        %v785 = vmul.f32 %v783, %v757
        %v786 = vmul.f32 %v784, %v758
        %v787 = vmul.f32 %v759, -1.45660715e-05
        %v788 = vmul.f32 %v760, -1.45660715e-05
        %v789 = vadd.f32 %v787, -0.00021337405
        %v790 = vadd.f32 %v788, -0.00021337405
        %v791 = vmul.f32 %v789, %v759
        %v792 = vmul.f32 %v790, %v760
        %v793 = vadd.f32 %v791, -0.001682827
        %v794 = vadd.f32 %v792, -0.001682827
        %v795 = vmul.f32 %v793, %v759
        %v796 = vmul.f32 %v794, %v760
        %v797 = vadd.f32 %v795, -0.0073733293
        %v798 = vadd.f32 %v796, -0.0073733293
        %v799 = vmul.f32 %v797, %v759
        %v800 = vmul.f32 %v798, %v760
        %v801 = vadd.f32 %v799, -0.014264739
        %v802 = vadd.f32 %v800, -0.014264739
        %v803 = vrcp.pop %v801
        %v804 = vmul.f32 %v785, %v803
        %v805 = vrcp.pop %v802
        %v806 = vmul.f32 %v786, %v805
        %v807 = vmax.f32 %v804, -1.0
        %v808 = vmax.f32 %v806, -1.0
        %v809 = vmin.f32 %v807, 1.0
        %v810 = vmin.f32 %v808, 1.0
        %v811 = vadd.f32 %v809, 1.0
        %v812 = vadd.f32 %v810, 1.0
        %v813 = vmul.f32 %v751, %v811
        %v814 = vmul.f32 %v752, %v812
        %817 = vrot.lane.b32.xlu0 %v813, 17
        %v818 = vpop.permute.xlu0 %817
        %819 = vrot.lane.b32.xlu0 %v814, 17
        %v820 = vpop.permute.xlu0 %819
        %v821 = vsel %vm529, %v524, %v818
        %v822 = vsel %vm529, %v818, %v820
        %v825 = vsel %vm518, %v821, 0.0
        %v826 = vsel %vm519, %v822, 0.0
        %827 = vrot.lane.b32.xlu0 %v813, 15
        %v828 = vpop.permute.xlu0 %827
        %829 = vrot.lane.b32.xlu0 %v814, 15
        %v830 = vpop.permute.xlu0 %829
        %v831 = vsel %vm546, %v541, %v828
        %v832 = vsel %vm546, %v828, %v830
        %v835 = vsel %vm538, %v831, 0.0
        %v836 = vsel %vm539, %v832, 0.0
        %837 = vrot.lane.b32.xlu0 %v813, 1
        %v838 = vpop.permute.xlu0 %837
        %839 = vrot.lane.b32.xlu0 %v814, 1
        %v840 = vpop.permute.xlu0 %839
        %v841 = vsel %vm559, %v554, %v838
        %v842 = vsel %vm559, %v838, %v840
        %v845 = vsel %vm518, %v841, 0.0
        %v846 = vsel %vm519, %v842, 0.0
        %847 = vrot.lane.b32.xlu0 %v813, 127
        %v848 = vpop.permute.xlu0 %847
        %849 = vrot.lane.b32.xlu0 %v814, 127
        %v850 = vpop.permute.xlu0 %849
        %v851 = vsel %vm572, %v848, %v850
        %v852 = vsel %vm572, %v850, %v571
        %v855 = vsel %vm538, %v851, 0.0
        %v856 = vsel %vm539, %v852, 0.0
        %857 = vrot.lane.b32.xlu0 %v813, 113
        %v858 = vpop.permute.xlu0 %857
        %859 = vrot.lane.b32.xlu0 %v814, 113
        %v860 = vpop.permute.xlu0 %859
        %v861 = vsel %vm585, %v858, %v860
        %v862 = vsel %vm585, %v860, %v584
        %v865 = vsel %vm518, %v861, 0.0
        %v866 = vsel %vm519, %v862, 0.0
        %867 = vrot.lane.b32.xlu0 %v813, 111
        %v868 = vpop.permute.xlu0 %867
        %869 = vrot.lane.b32.xlu0 %v814, 111
        %v870 = vpop.permute.xlu0 %869
        %v871 = vsel %vm598, %v868, %v870
        %v872 = vsel %vm598, %v870, %v597
        %v875 = vsel %vm538, %v871, 0.0
        %v876 = vsel %vm539, %v872, 0.0
        %877 = vrot.lane.b32.xlu0 %v813, 16
        %v878 = vpop.permute.xlu0 %877
        %879 = vrot.lane.b32.xlu0 %v814, 16
        %v880 = vpop.permute.xlu0 %879
        %v881 = vsel %vm611, %v606, %v878
        %v882 = vsel %vm611, %v878, %v880
        %885 = vrot.lane.b32.xlu0 %v813, 112
        %v886 = vpop.permute.xlu0 %885
        %887 = vrot.lane.b32.xlu0 %v814, 112
        %v888 = vpop.permute.xlu0 %887
        %v889 = vsel %vm622, %v886, %v888
        %v890 = vsel %vm622, %v888, %v621
        %v893 = vld [vmem:[%s5] sm:$0xff]
        %v895 = vsel %vm628, %v893, 0
        %897 = vmatprep.subr.mxu0 %v826
        %898 = vmatpush1.msra.mxu0 %v825
        %899 = vmatprep.subr.mxu0 %v882
        %900 = vmatpush1.msra.mxu0 %v881
        %901 = vmatprep.subr.mxu0 %v836
        %902 = vmatpush1.msra.mxu0 %v835
        %903 = vmatprep.subr.mxu0 %v846
        %904 = vmatpush1.msra.mxu0 %v845
        %905 = vmatprep.subr.mxu0 %v814
        %906 = vmatpush1.msra.mxu0 %v813
        %907 = vmatprep.subr.mxu0 %v856
        %908 = vmatpush1.msra.mxu0 %v855
        %909 = vmatprep.subr.mxu0 %v866
        %910 = vmatpush1.msra.mxu0 %v865
        %911 = vmatprep.subr.mxu0 %v890
        %912 = vmatpush1.msra.mxu0 %v889
        %913 = vmatprep.subr.mxu0 %v876
        %914 = vmatpush1.msra.mxu0 %v875
        %915 = vmatprep.subr.mxu0 0.0
        %916 = vmatpush1.msra.mxu0 0.0
        %917 = vmatprep.subr.mxu0 0.0
        %918 = vmatpush1.msra.mxu0 0.0
        %919 = vmatprep.subr.mxu0 0.0
        %920 = vmatpush1.msra.mxu0 0.0
        %921 = vmatprep.subr.mxu0 0.0
        %922 = vmatpush1.msra.mxu0 0.0
        %923 = vmatprep.subr.mxu0 0.0
        %924 = vmatpush1.msra.mxu0 0.0
        %925 = vmatprep.subr.mxu0 0.0
        %926 = vmatpush1.msra.mxu0 0.0
        %927 = vmatprep.subr.mxu0 0.0
        %928 = vmatpush1.msra.mxu0 0.0
        %929 = vmatprep.subr.mxu0 0.0
        %930 = vmatpush1.msra.mxu0 0.0
        %931 = vmatprep.subr.mxu0 0.0
        %932 = vmatpush1.msra.mxu0 0.0
        %933 = vmatprep.subr.mxu0 0.0
        %934 = vmatpush1.msra.mxu0 0.0
        %935 = vmatprep.subr.mxu0 0.0
        %936 = vmatpush1.msra.mxu0 0.0
        %937 = vmatprep.subr.mxu0 0.0
        %938 = vmatpush1.msra.mxu0 0.0
        %939 = vmatprep.subr.mxu0 0.0
        %940 = vmatpush1.msra.mxu0 0.0
        %941 = vmatprep.subr.mxu0 0.0
        %942 = vmatpush1.msra.mxu0 0.0
        %943 = vmatprep.subr.mxu0 0.0
        %944 = vmatpush1.msra.mxu0 0.0
        %945 = vmatprep.subr.mxu0 0.0
        %946 = vmatpush1.msra.mxu0 0.0
        %947 = vmatprep.subr.mxu0 0.0
        %948 = vmatpush1.msra.mxu0 0.0
        %949 = vmatprep.subr.mxu0 0.0
        %950 = vmatpush1.msra.mxu0 0.0
        %951 = vmatprep.subr.mxu0 0.0
        %952 = vmatpush1.msra.mxu0 0.0
        %953 = vmatprep.subr.mxu0 0.0
        %954 = vmatpush1.msra.mxu0 0.0
        %955 = vmatprep.subr.mxu0 0.0
        %956 = vmatpush1.msra.mxu0 0.0
        %957 = vmatprep.subr.mxu0 0.0
        %958 = vmatpush1.msra.mxu0 0.0
        %959 = vmatprep.subr.mxu0 0.0
        %960 = vmatpush1.msra.mxu0 0.0
        %961 = vmatprep.mubr.f32.mxu0 0.0
        %962 = vmatmul.mubr.f32.gmra.mrb[0].mxu0 %v895
        %v963 = vpop.f32.mrb[0].mxu0
        %v964 = vadd.f32 0.0, %v963
        %v965 = vpop.f32.mrb[0].mxu0
        %v966 = vadd.f32 0.0, %v965
        %967 = vdwg.mxu0
        %v968 = vld [vmem:[%s6] sm:$0xff]
        %v969 = vld [vmem:[%s7] sm:$0xff]
        %v970 = vadd.f32 %v964, %v966
        %971 = vadd.xlane.f32.xlu0 %v970
        %v972 = vpop.xlane.xlu0 %971
        %v973 = vmul.f32 %v972, %v708
        %v974 = vrot.slane %v973, 4
        %v975 = vadd.f32 %v973, %v974
        %v976 = vrot.slane %v975, 2
        %v977 = vadd.f32 %v975, %v976
        %v978 = vrot.slane %v977, 1
        %v979 = vadd.f32 %v977, %v978
        %v980 = vmul.f32 %v979, %v716
        %v981 = vsub.f32 %v964, %v980
        %v982 = vsub.f32 %v966, %v980
        %v983 = vmul.f32 %v981, %v981
        %v984 = vmul.f32 %v982, %v982
        %v985 = vadd.f32 %v983, %v984
        %986 = vadd.xlane.f32.xlu0 %v985
        %v987 = vpop.xlane.xlu0 %986
        %v988 = vmul.f32 %v987, %v708
        %v989 = vrot.slane %v988, 4
        %v990 = vadd.f32 %v988, %v989
        %v991 = vrot.slane %v990, 2
        %v992 = vadd.f32 %v990, %v991
        %v993 = vrot.slane %v992, 1
        %v994 = vadd.f32 %v992, %v993
        %v995 = vmul.f32 %v994, %v716
        %v996 = vadd.f32 %v995, 1e-05
        %v997 = vrsqrt.pop %v996
        %v998 = vmul.f32 %v981, %v997
        %v999 = vmul.f32 %v982, %v997
        %1001 = vset.pattern.permute.xlu0 0
        %1002 = vperm.xlu0 %1001, %v968
        %v1003 = vpop.permute.xlu0 %1002
        %v1005 = vmul.f32 %v998, %v1003
        %v1006 = vmul.f32 %v999, %v1003
        %1008 = vset.pattern.permute.xlu0 0
        %1009 = vperm.xlu0 %1008, %v969
        %v1010 = vpop.permute.xlu0 %1009
        %v1012 = vadd.f32 %v1005, %v1010
        %v1013 = vadd.f32 %v1006, %v1010
        %v1014 = vadd.f32 %v483, %v1012
        %v1015 = vadd.f32 %v484, %v1013
        %v1016 = vmul.f32 %v1014, 0.5
        %v1017 = vmul.f32 %v1015, 0.5
        %v1018 = vmul.f32 %v1014, 0.70710677
        %v1019 = vmul.f32 %v1015, 0.70710677
        %v1020 = vmax.f32 %v1018, -4.0
        %v1021 = vmax.f32 %v1019, -4.0
        %v1022 = vmin.f32 %v1020, 4.0
        %v1023 = vmin.f32 %v1021, 4.0
        %v1024 = vmul.f32 %v1022, %v1022
        %v1025 = vmul.f32 %v1023, %v1023
        %v1026 = vmul.f32 %v1024, -2.7261424e-10
        %v1027 = vmul.f32 %v1025, -2.7261424e-10
        %v1028 = vadd.f32 %v1026, 2.7706815e-08
        %v1029 = vadd.f32 %v1027, 2.7706815e-08
        %v1030 = vmul.f32 %v1028, %v1024
        %v1031 = vmul.f32 %v1029, %v1025
        %v1032 = vadd.f32 %v1030, -2.101024e-06
        %v1033 = vadd.f32 %v1031, -2.101024e-06
        %v1034 = vmul.f32 %v1032, %v1024
        %v1035 = vmul.f32 %v1033, %v1025
        %v1036 = vadd.f32 %v1034, -5.6925062e-05
        %v1037 = vadd.f32 %v1035, -5.6925062e-05
        %v1038 = vmul.f32 %v1036, %v1024
        %v1039 = vmul.f32 %v1037, %v1025
        %v1040 = vadd.f32 %v1038, -0.00073499064
        %v1041 = vadd.f32 %v1039, -0.00073499064
        %v1042 = vmul.f32 %v1040, %v1024
        %v1043 = vmul.f32 %v1041, %v1025
        %v1044 = vadd.f32 %v1042, -0.0029546
        %v1045 = vadd.f32 %v1043, -0.0029546
        %v1046 = vmul.f32 %v1044, %v1024
        %v1047 = vmul.f32 %v1045, %v1025
        %v1048 = vadd.f32 %v1046, -0.016096033
        %v1049 = vadd.f32 %v1047, -0.016096033
        %v1050 = vmul.f32 %v1048, %v1022
        %v1051 = vmul.f32 %v1049, %v1023
        %v1052 = vmul.f32 %v1024, -1.45660715e-05
        %v1053 = vmul.f32 %v1025, -1.45660715e-05
        %v1054 = vadd.f32 %v1052, -0.00021337405
        %v1055 = vadd.f32 %v1053, -0.00021337405
        %v1056 = vmul.f32 %v1054, %v1024
        %v1057 = vmul.f32 %v1055, %v1025
        %v1058 = vadd.f32 %v1056, -0.001682827
        %v1059 = vadd.f32 %v1057, -0.001682827
        %v1060 = vmul.f32 %v1058, %v1024
        %v1061 = vmul.f32 %v1059, %v1025
        %v1062 = vadd.f32 %v1060, -0.0073733293
        %v1063 = vadd.f32 %v1061, -0.0073733293
        %v1064 = vmul.f32 %v1062, %v1024
        %v1065 = vmul.f32 %v1063, %v1025
        %v1066 = vadd.f32 %v1064, -0.014264739
        %v1067 = vadd.f32 %v1065, -0.014264739
        %v1068 = vrcp.pop %v1066
        %v1069 = vmul.f32 %v1050, %v1068
        %v1070 = vrcp.pop %v1067
        %v1071 = vmul.f32 %v1051, %v1070
        %v1072 = vmax.f32 %v1069, -1.0
        %v1073 = vmax.f32 %v1071, -1.0
        %v1074 = vmin.f32 %v1072, 1.0
        %v1075 = vmin.f32 %v1073, 1.0
        %v1076 = vadd.f32 %v1074, 1.0
        %v1077 = vadd.f32 %v1075, 1.0
        %v1078 = vmul.f32 %v1016, %v1076
        %v1079 = vmul.f32 %v1017, %v1077
        %1082 = vrot.lane.b32.xlu0 %v1078, 17
        %v1083 = vpop.permute.xlu0 %1082
        %1084 = vrot.lane.b32.xlu0 %v1079, 17
        %v1085 = vpop.permute.xlu0 %1084
        %v1086 = vsel %vm529, %v524, %v1083
        %v1087 = vsel %vm529, %v1083, %v1085
        %v1090 = vsel %vm518, %v1086, 0.0
        %v1091 = vsel %vm519, %v1087, 0.0
        %1092 = vrot.lane.b32.xlu0 %v1078, 15
        %v1093 = vpop.permute.xlu0 %1092
        %1094 = vrot.lane.b32.xlu0 %v1079, 15
        %v1095 = vpop.permute.xlu0 %1094
        %v1096 = vsel %vm546, %v541, %v1093
        %v1097 = vsel %vm546, %v1093, %v1095
        %v1100 = vsel %vm538, %v1096, 0.0
        %v1101 = vsel %vm539, %v1097, 0.0
        %1102 = vrot.lane.b32.xlu0 %v1078, 1
        %v1103 = vpop.permute.xlu0 %1102
        %1104 = vrot.lane.b32.xlu0 %v1079, 1
        %v1105 = vpop.permute.xlu0 %1104
        %v1106 = vsel %vm559, %v554, %v1103
        %v1107 = vsel %vm559, %v1103, %v1105
        %v1110 = vsel %vm518, %v1106, 0.0
        %v1111 = vsel %vm519, %v1107, 0.0
        %1112 = vrot.lane.b32.xlu0 %v1078, 127
        %v1113 = vpop.permute.xlu0 %1112
        %1114 = vrot.lane.b32.xlu0 %v1079, 127
        %v1115 = vpop.permute.xlu0 %1114
        %v1116 = vsel %vm572, %v1113, %v1115
        %v1117 = vsel %vm572, %v1115, %v571
        %v1120 = vsel %vm538, %v1116, 0.0
        %v1121 = vsel %vm539, %v1117, 0.0
        %1122 = vrot.lane.b32.xlu0 %v1078, 113
        %v1123 = vpop.permute.xlu0 %1122
        %1124 = vrot.lane.b32.xlu0 %v1079, 113
        %v1125 = vpop.permute.xlu0 %1124
        %v1126 = vsel %vm585, %v1123, %v1125
        %v1127 = vsel %vm585, %v1125, %v584
        %v1130 = vsel %vm518, %v1126, 0.0
        %v1131 = vsel %vm519, %v1127, 0.0
        %1132 = vrot.lane.b32.xlu0 %v1078, 111
        %v1133 = vpop.permute.xlu0 %1132
        %1134 = vrot.lane.b32.xlu0 %v1079, 111
        %v1135 = vpop.permute.xlu0 %1134
        %v1136 = vsel %vm598, %v1133, %v1135
        %v1137 = vsel %vm598, %v1135, %v597
        %v1140 = vsel %vm538, %v1136, 0.0
        %v1141 = vsel %vm539, %v1137, 0.0
        %1142 = vrot.lane.b32.xlu0 %v1078, 16
        %v1143 = vpop.permute.xlu0 %1142
        %1144 = vrot.lane.b32.xlu0 %v1079, 16
        %v1145 = vpop.permute.xlu0 %1144
        %v1146 = vsel %vm611, %v606, %v1143
        %v1147 = vsel %vm611, %v1143, %v1145
        %1150 = vrot.lane.b32.xlu0 %v1078, 112
        %v1151 = vpop.permute.xlu0 %1150
        %1152 = vrot.lane.b32.xlu0 %v1079, 112
        %v1153 = vpop.permute.xlu0 %1152
        %v1154 = vsel %vm622, %v1151, %v1153
        %v1155 = vsel %vm622, %v1153, %v621
        %v1158 = vld [vmem:[%s8] sm:$0xff]
        %v1160 = vsel %vm628, %v1158, 0
        %1162 = vmatprep.subr.mxu0 %v1091
        %1163 = vmatpush1.msra.mxu0 %v1090
        %1164 = vmatprep.subr.mxu0 %v1147
        %1165 = vmatpush1.msra.mxu0 %v1146
        %1166 = vmatprep.subr.mxu0 %v1101
        %1167 = vmatpush1.msra.mxu0 %v1100
        %1168 = vmatprep.subr.mxu0 %v1111
        %1169 = vmatpush1.msra.mxu0 %v1110
        %1170 = vmatprep.subr.mxu0 %v1079
        %1171 = vmatpush1.msra.mxu0 %v1078
        %1172 = vmatprep.subr.mxu0 %v1121
        %1173 = vmatpush1.msra.mxu0 %v1120
        %1174 = vmatprep.subr.mxu0 %v1131
        %1175 = vmatpush1.msra.mxu0 %v1130
        %1176 = vmatprep.subr.mxu0 %v1155
        %1177 = vmatpush1.msra.mxu0 %v1154
        %1178 = vmatprep.subr.mxu0 %v1141
        %1179 = vmatpush1.msra.mxu0 %v1140
        %1180 = vmatprep.subr.mxu0 0.0
        %1181 = vmatpush1.msra.mxu0 0.0
        %1182 = vmatprep.subr.mxu0 0.0
        %1183 = vmatpush1.msra.mxu0 0.0
        %1184 = vmatprep.subr.mxu0 0.0
        %1185 = vmatpush1.msra.mxu0 0.0
        %1186 = vmatprep.subr.mxu0 0.0
        %1187 = vmatpush1.msra.mxu0 0.0
        %1188 = vmatprep.subr.mxu0 0.0
        %1189 = vmatpush1.msra.mxu0 0.0
        %1190 = vmatprep.subr.mxu0 0.0
        %1191 = vmatpush1.msra.mxu0 0.0
        %1192 = vmatprep.subr.mxu0 0.0
        %1193 = vmatpush1.msra.mxu0 0.0
        %1194 = vmatprep.subr.mxu0 0.0
        %1195 = vmatpush1.msra.mxu0 0.0
        %1196 = vmatprep.subr.mxu0 0.0
        %1197 = vmatpush1.msra.mxu0 0.0
        %1198 = vmatprep.subr.mxu0 0.0
        %1199 = vmatpush1.msra.mxu0 0.0
        %1200 = vmatprep.subr.mxu0 0.0
        %1201 = vmatpush1.msra.mxu0 0.0
        %1202 = vmatprep.subr.mxu0 0.0
        %1203 = vmatpush1.msra.mxu0 0.0
        %1204 = vmatprep.subr.mxu0 0.0
        %1205 = vmatpush1.msra.mxu0 0.0
        %1206 = vmatprep.subr.mxu0 0.0
        %1207 = vmatpush1.msra.mxu0 0.0
        %1208 = vmatprep.subr.mxu0 0.0
        %1209 = vmatpush1.msra.mxu0 0.0
        %1210 = vmatprep.subr.mxu0 0.0
        %1211 = vmatpush1.msra.mxu0 0.0
        %1212 = vmatprep.subr.mxu0 0.0
        %1213 = vmatpush1.msra.mxu0 0.0
        %1214 = vmatprep.subr.mxu0 0.0
        %1215 = vmatpush1.msra.mxu0 0.0
        %1216 = vmatprep.subr.mxu0 0.0
        %1217 = vmatpush1.msra.mxu0 0.0
        %1218 = vmatprep.subr.mxu0 0.0
        %1219 = vmatpush1.msra.mxu0 0.0
        %1220 = vmatprep.subr.mxu0 0.0
        %1221 = vmatpush1.msra.mxu0 0.0
        %1222 = vmatprep.subr.mxu0 0.0
        %1223 = vmatpush1.msra.mxu0 0.0
        %1224 = vmatprep.subr.mxu0 0.0
        %1225 = vmatpush1.msra.mxu0 0.0
        %1226 = vmatprep.mubr.f32.mxu0 0.0
        %1227 = vmatmul.mubr.f32.gmra.mrb[0].mxu0 %v1160
        %v1228 = vpop.f32.mrb[0].mxu0
        %v1229 = vadd.f32 0.0, %v1228
        %v1230 = vpop.f32.mrb[0].mxu0
        %v1231 = vadd.f32 0.0, %v1230
        %1232 = vdwg.mxu0
        %v1233 = vld [vmem:[%s9] sm:$0xff]
        %v1234 = vld [vmem:[%s10] sm:$0xff]
        %vm1235 = vcmask 1043456
        %v1236 = vsel %vm1235, %v1229, 0.0
        %v1237 = vsel %vm1235, %v1231, 0.0
        %v1238 = vadd.f32 %v1236, %v1237
        %1239 = vadd.xlane.f32.xlu0 %v1238
        %v1240 = vpop.xlane.xlu0 %1239
        %v1241 = vmul.f32 %v1240, %v708
        %v1242 = vsel %vm1235, %v1241, 0.0
        %v1243 = vrot.slane %v1242, 4
        %v1244 = vadd.f32 %v1242, %v1243
        %v1245 = vrot.slane %v1244, 2
        %v1246 = vadd.f32 %v1244, %v1245
        %v1247 = vrot.slane %v1246, 1
        %v1248 = vadd.f32 %v1246, %v1247
        %v1249 = vrcp.pop 4.0
        %v1250 = vmul.f32 %v1248, %v1249
        %v1251 = vsub.f32 %v1229, %v1250
        %v1252 = vsub.f32 %v1231, %v1250
        %v1253 = vmul.f32 %v1251, %v1251
        %v1254 = vmul.f32 %v1252, %v1252
        %v1255 = vsel %vm1235, %v1253, 0.0
        %v1256 = vsel %vm1235, %v1254, 0.0
        %v1257 = vadd.f32 %v1255, %v1256
        %1258 = vadd.xlane.f32.xlu0 %v1257
        %v1259 = vpop.xlane.xlu0 %1258
        %v1260 = vmul.f32 %v1259, %v708
        %v1261 = vsel %vm1235, %v1260, 0.0
        %v1262 = vrot.slane %v1261, 4
        %v1263 = vadd.f32 %v1261, %v1262
        %v1264 = vrot.slane %v1263, 2
        %v1265 = vadd.f32 %v1263, %v1264
        %v1266 = vrot.slane %v1265, 1
        %v1267 = vadd.f32 %v1265, %v1266
        %v1268 = vmul.f32 %v1267, %v1249
        %v1269 = vadd.f32 %v1268, 1e-05
        %v1270 = vrsqrt.pop %v1269
        %v1271 = vmul.f32 %v1251, %v1270
        %v1272 = vmul.f32 %v1252, %v1270
        %1274 = vset.pattern.permute.xlu0 0
        %1275 = vperm.xlu0 %1274, %v1233
        %v1276 = vpop.permute.xlu0 %1275
        %v1278 = vmul.f32 %v1271, %v1276
        %v1279 = vmul.f32 %v1272, %v1276
        %1281 = vset.pattern.permute.xlu0 0
        %1282 = vperm.xlu0 %1281, %v1234
        %v1283 = vpop.permute.xlu0 %1282
        %v1285 = vadd.f32 %v1278, %v1283
        %v1286 = vadd.f32 %v1279, %v1283
        %v1287 = vmul.f32 %v1285, 0.5
        %v1288 = vmul.f32 %v1286, 0.5
        %v1289 = vmul.f32 %v1285, 0.70710677
        %v1290 = vmul.f32 %v1286, 0.70710677
        %v1291 = vmax.f32 %v1289, -4.0
        %v1292 = vmax.f32 %v1290, -4.0
        %v1293 = vmin.f32 %v1291, 4.0
        %v1294 = vmin.f32 %v1292, 4.0
        %v1295 = vmul.f32 %v1293, %v1293
        %v1296 = vmul.f32 %v1294, %v1294
        %v1297 = vmul.f32 %v1295, -2.7261424e-10
        %v1298 = vmul.f32 %v1296, -2.7261424e-10
        %v1299 = vadd.f32 %v1297, 2.7706815e-08
        %v1300 = vadd.f32 %v1298, 2.7706815e-08
        %v1301 = vmul.f32 %v1299, %v1295
        %v1302 = vmul.f32 %v1300, %v1296
        %v1303 = vadd.f32 %v1301, -2.101024e-06
        %v1304 = vadd.f32 %v1302, -2.101024e-06
        %v1305 = vmul.f32 %v1303, %v1295
        %v1306 = vmul.f32 %v1304, %v1296
        %v1307 = vadd.f32 %v1305, -5.6925062e-05
        %v1308 = vadd.f32 %v1306, -5.6925062e-05
        %v1309 = vmul.f32 %v1307, %v1295
        %v1310 = vmul.f32 %v1308, %v1296
        %v1311 = vadd.f32 %v1309, -0.00073499064
        %v1312 = vadd.f32 %v1310, -0.00073499064
        %v1313 = vmul.f32 %v1311, %v1295
        %v1314 = vmul.f32 %v1312, %v1296
        %v1315 = vadd.f32 %v1313, -0.0029546
        %v1316 = vadd.f32 %v1314, -0.0029546
        %v1317 = vmul.f32 %v1315, %v1295
        %v1318 = vmul.f32 %v1316, %v1296
        %v1319 = vadd.f32 %v1317, -0.016096033
        %v1320 = vadd.f32 %v1318, -0.016096033
        %v1321 = vmul.f32 %v1319, %v1293
        %v1322 = vmul.f32 %v1320, %v1294
        %v1323 = vmul.f32 %v1295, -1.45660715e-05
        %v1324 = vmul.f32 %v1296, -1.45660715e-05
        %v1325 = vadd.f32 %v1323, -0.00021337405
        %v1326 = vadd.f32 %v1324, -0.00021337405
        %v1327 = vmul.f32 %v1325, %v1295
        %v1328 = vmul.f32 %v1326, %v1296
        %v1329 = vadd.f32 %v1327, -0.001682827
        %v1330 = vadd.f32 %v1328, -0.001682827
        %v1331 = vmul.f32 %v1329, %v1295
        %v1332 = vmul.f32 %v1330, %v1296
        %v1333 = vadd.f32 %v1331, -0.0073733293
        %v1334 = vadd.f32 %v1332, -0.0073733293
        %v1335 = vmul.f32 %v1333, %v1295
        %v1336 = vmul.f32 %v1334, %v1296
        %v1337 = vadd.f32 %v1335, -0.014264739
        %v1338 = vadd.f32 %v1336, -0.014264739
        %v1339 = vrcp.pop %v1337
        %v1340 = vmul.f32 %v1321, %v1339
        %v1341 = vrcp.pop %v1338
        %v1342 = vmul.f32 %v1322, %v1341
        %v1343 = vmax.f32 %v1340, -1.0
        %v1344 = vmax.f32 %v1342, -1.0
        %v1345 = vmin.f32 %v1343, 1.0
        %v1346 = vmin.f32 %v1344, 1.0
        %v1347 = vadd.f32 %v1345, 1.0
        %v1348 = vadd.f32 %v1346, 1.0
        %v1349 = vmul.f32 %v1287, %v1347
        %v1350 = vmul.f32 %v1288, %v1348
        %1353 = vrot.lane.b32.xlu0 %v1349, 17
        %v1354 = vpop.permute.xlu0 %1353
        %1355 = vrot.lane.b32.xlu0 %v1350, 17
        %v1356 = vpop.permute.xlu0 %1355
        %v1357 = vsel %vm529, %v524, %v1354
        %v1358 = vsel %vm529, %v1354, %v1356
        %v1361 = vsel %vm518, %v1357, 0.0
        %v1362 = vsel %vm519, %v1358, 0.0
        %1363 = vrot.lane.b32.xlu0 %v1349, 15
        %v1364 = vpop.permute.xlu0 %1363
        %1365 = vrot.lane.b32.xlu0 %v1350, 15
        %v1366 = vpop.permute.xlu0 %1365
        %v1367 = vsel %vm546, %v541, %v1364
        %v1368 = vsel %vm546, %v1364, %v1366
        %v1371 = vsel %vm538, %v1367, 0.0
        %v1372 = vsel %vm539, %v1368, 0.0
        %1373 = vrot.lane.b32.xlu0 %v1349, 1
        %v1374 = vpop.permute.xlu0 %1373
        %1375 = vrot.lane.b32.xlu0 %v1350, 1
        %v1376 = vpop.permute.xlu0 %1375
        %v1377 = vsel %vm559, %v554, %v1374
        %v1378 = vsel %vm559, %v1374, %v1376
        %v1381 = vsel %vm518, %v1377, 0.0
        %v1382 = vsel %vm519, %v1378, 0.0
        %1383 = vrot.lane.b32.xlu0 %v1349, 127
        %v1384 = vpop.permute.xlu0 %1383
        %1385 = vrot.lane.b32.xlu0 %v1350, 127
        %v1386 = vpop.permute.xlu0 %1385
        %v1387 = vsel %vm572, %v1384, %v1386
        %v1388 = vsel %vm572, %v1386, %v571
        %v1391 = vsel %vm538, %v1387, 0.0
        %v1392 = vsel %vm539, %v1388, 0.0
        %1393 = vrot.lane.b32.xlu0 %v1349, 113
        %v1394 = vpop.permute.xlu0 %1393
        %1395 = vrot.lane.b32.xlu0 %v1350, 113
        %v1396 = vpop.permute.xlu0 %1395
        %v1397 = vsel %vm585, %v1394, %v1396
        %v1398 = vsel %vm585, %v1396, %v584
        %v1401 = vsel %vm518, %v1397, 0.0
        %v1402 = vsel %vm519, %v1398, 0.0
        %1403 = vrot.lane.b32.xlu0 %v1349, 111
        %v1404 = vpop.permute.xlu0 %1403
        %1405 = vrot.lane.b32.xlu0 %v1350, 111
        %v1406 = vpop.permute.xlu0 %1405
        %v1407 = vsel %vm598, %v1404, %v1406
        %v1408 = vsel %vm598, %v1406, %v597
        %v1411 = vsel %vm538, %v1407, 0.0
        %v1412 = vsel %vm539, %v1408, 0.0
        %1413 = vrot.lane.b32.xlu0 %v1349, 16
        %v1414 = vpop.permute.xlu0 %1413
        %1415 = vrot.lane.b32.xlu0 %v1350, 16
        %v1416 = vpop.permute.xlu0 %1415
        %v1417 = vsel %vm611, %v606, %v1414
        %v1418 = vsel %vm611, %v1414, %v1416
        %1421 = vrot.lane.b32.xlu0 %v1349, 112
        %v1422 = vpop.permute.xlu0 %1421
        %1423 = vrot.lane.b32.xlu0 %v1350, 112
        %v1424 = vpop.permute.xlu0 %1423
        %v1425 = vsel %vm622, %v1422, %v1424
        %v1426 = vsel %vm622, %v1424, %v621
        %v1429 = vld [vmem:[%s11] sm:$0xff]
        %v1431 = vsel %vm628, %v1429, 0
        %1433 = vmatprep.subr.mxu0 %v1362
        %1434 = vmatpush1.msra.mxu0 %v1361
        %1435 = vmatprep.subr.mxu0 %v1418
        %1436 = vmatpush1.msra.mxu0 %v1417
        %1437 = vmatprep.subr.mxu0 %v1372
        %1438 = vmatpush1.msra.mxu0 %v1371
        %1439 = vmatprep.subr.mxu0 %v1382
        %1440 = vmatpush1.msra.mxu0 %v1381
        %1441 = vmatprep.subr.mxu0 %v1350
        %1442 = vmatpush1.msra.mxu0 %v1349
        %1443 = vmatprep.subr.mxu0 %v1392
        %1444 = vmatpush1.msra.mxu0 %v1391
        %1445 = vmatprep.subr.mxu0 %v1402
        %1446 = vmatpush1.msra.mxu0 %v1401
        %1447 = vmatprep.subr.mxu0 %v1426
        %1448 = vmatpush1.msra.mxu0 %v1425
        %1449 = vmatprep.subr.mxu0 %v1412
        %1450 = vmatpush1.msra.mxu0 %v1411
        %1451 = vmatprep.subr.mxu0 0.0
        %1452 = vmatpush1.msra.mxu0 0.0
        %1453 = vmatprep.subr.mxu0 0.0
        %1454 = vmatpush1.msra.mxu0 0.0
        %1455 = vmatprep.subr.mxu0 0.0
        %1456 = vmatpush1.msra.mxu0 0.0
        %1457 = vmatprep.subr.mxu0 0.0
        %1458 = vmatpush1.msra.mxu0 0.0
        %1459 = vmatprep.subr.mxu0 0.0
        %1460 = vmatpush1.msra.mxu0 0.0
        %1461 = vmatprep.subr.mxu0 0.0
        %1462 = vmatpush1.msra.mxu0 0.0
        %1463 = vmatprep.subr.mxu0 0.0
        %1464 = vmatpush1.msra.mxu0 0.0
        %1465 = vmatprep.subr.mxu0 0.0
        %1466 = vmatpush1.msra.mxu0 0.0
        %1467 = vmatprep.subr.mxu0 0.0
        %1468 = vmatpush1.msra.mxu0 0.0
        %1469 = vmatprep.subr.mxu0 0.0
        %1470 = vmatpush1.msra.mxu0 0.0
        %1471 = vmatprep.subr.mxu0 0.0
        %1472 = vmatpush1.msra.mxu0 0.0
        %1473 = vmatprep.subr.mxu0 0.0
        %1474 = vmatpush1.msra.mxu0 0.0
        %1475 = vmatprep.subr.mxu0 0.0
        %1476 = vmatpush1.msra.mxu0 0.0
        %1477 = vmatprep.subr.mxu0 0.0
        %1478 = vmatpush1.msra.mxu0 0.0
        %1479 = vmatprep.subr.mxu0 0.0
        %1480 = vmatpush1.msra.mxu0 0.0
        %1481 = vmatprep.subr.mxu0 0.0
        %1482 = vmatpush1.msra.mxu0 0.0
        %1483 = vmatprep.subr.mxu0 0.0
        %1484 = vmatpush1.msra.mxu0 0.0
        %1485 = vmatprep.subr.mxu0 0.0
        %1486 = vmatpush1.msra.mxu0 0.0
        %1487 = vmatprep.subr.mxu0 0.0
        %1488 = vmatpush1.msra.mxu0 0.0
        %1489 = vmatprep.subr.mxu0 0.0
        %1490 = vmatpush1.msra.mxu0 0.0
        %1491 = vmatprep.subr.mxu0 0.0
        %1492 = vmatpush1.msra.mxu0 0.0
        %1493 = vmatprep.subr.mxu0 0.0
        %1494 = vmatpush1.msra.mxu0 0.0
        %1495 = vmatprep.subr.mxu0 0.0
        %1496 = vmatpush1.msra.mxu0 0.0
        %1497 = vmatprep.mubr.f32.mxu0 0.0
        %1498 = vmatmul.mubr.f32.gmra.mrb[0].mxu0 %v1431
        %v1499 = vpop.f32.mrb[0].mxu0
        %v1500 = vadd.f32 0.0, %v1499
        %v1501 = vpop.f32.mrb[0].mxu0
        %v1502 = vadd.f32 0.0, %v1501
        %1503 = vdwg.mxu0
        %v1504 = vld [vmem:[%s12] sm:$0xff]
        %v1505 = vld [vmem:[%s13] sm:$0xff]
        %v1506 = vadd.f32 %v1500, %v1502
        %1507 = vadd.xlane.f32.xlu0 %v1506
        %v1508 = vpop.xlane.xlu0 %1507
        %v1509 = vmul.f32 %v1508, %v708
        %v1510 = vrot.slane %v1509, 4
        %v1511 = vadd.f32 %v1509, %v1510
        %v1512 = vrot.slane %v1511, 2
        %v1513 = vadd.f32 %v1511, %v1512
        %v1514 = vrot.slane %v1513, 1
        %v1515 = vadd.f32 %v1513, %v1514
        %v1516 = vmul.f32 %v1515, %v716
        %v1517 = vsub.f32 %v1500, %v1516
        %v1518 = vsub.f32 %v1502, %v1516
        %v1519 = vmul.f32 %v1517, %v1517
        %v1520 = vmul.f32 %v1518, %v1518
        %v1521 = vadd.f32 %v1519, %v1520
        %1522 = vadd.xlane.f32.xlu0 %v1521
        %v1523 = vpop.xlane.xlu0 %1522
        %v1524 = vmul.f32 %v1523, %v708
        %v1525 = vrot.slane %v1524, 4
        %v1526 = vadd.f32 %v1524, %v1525
        %v1527 = vrot.slane %v1526, 2
        %v1528 = vadd.f32 %v1526, %v1527
        %v1529 = vrot.slane %v1528, 1
        %v1530 = vadd.f32 %v1528, %v1529
        %v1531 = vmul.f32 %v1530, %v716
        %v1532 = vadd.f32 %v1531, 1e-05
        %v1533 = vrsqrt.pop %v1532
        %v1534 = vmul.f32 %v1517, %v1533
        %v1535 = vmul.f32 %v1518, %v1533
        %1537 = vset.pattern.permute.xlu0 0
        %1538 = vperm.xlu0 %1537, %v1504
        %v1539 = vpop.permute.xlu0 %1538
        %v1541 = vmul.f32 %v1534, %v1539
        %v1542 = vmul.f32 %v1535, %v1539
        %1544 = vset.pattern.permute.xlu0 0
        %1545 = vperm.xlu0 %1544, %v1505
        %v1546 = vpop.permute.xlu0 %1545
        %v1548 = vadd.f32 %v1541, %v1546
        %v1549 = vadd.f32 %v1542, %v1546
        %v1550 = vld [vmem:[%s482] sm:$0xff]
        %1552 = vset.pattern.permute.xlu0 0
        %1553 = vperm.xlu0 %1552, %v1550
        %v1554 = vpop.permute.xlu0 %1553
        %v1556 = vadd.f32 %v1548, %v1554
        %v1557 = vadd.f32 %v1549, %v1554
        %1558 = vst [vmem:[%s473] sm:$0xff] %v1556
        %1559 = vst [vmem:[%s473 + $0x8] sm:$0xff] %v1557
        %s1560 = sand.u32 %s340, 1
        %s1561 = scalar_lea.sflag [#allocation3], %s1560
        %s1562 = sand.u32 %s340, 1
        %s1563 = smul.addr %s1562, 16
        %s1564 = scalar_lea.vmem [#allocation2], %s1563
        // Predicated region
        $region77: #{tpu_custom_call.1} parent=75 // pred_check
          %p1565 = pneg %p350
        $region78: #{tpu_custom_call.1} parent=75 // pred_check_branch
          %1567 = sbr.rel (%p1565) target = $region80
        $region79: #{tpu_custom_call.1} parent=75 // pred_region
          %s1569 = ssub.s32 256, 256
          %1570 = vsyncadd %s1561, %s1569
          %s1571 = smul.addr %s28, 2
          %s1572 = smul.addr %s1571, 128
          %s1573 = scalar_lea.hbm %s14, %s1572
          %s1575 = sshll.u32 %s1564, 4
          %s1576 = int_to_ptr.vmem [resolvable:$true] %s1575
          %1578 = dma.vmem_to_hbm [thread:$0]  %s1576, 256, %s1573, %s1561
        $region80: #{tpu_custom_call.1} parent=75 // pred_fallthru
          _
      $region76: #{tpu_custom_call.1} parent=5 // pred_fallthru
        _
      %p1579 = scmp.le.s32.totalorder 2, %s23
      // Predicated region
      $region81: #{tpu_custom_call.1} parent=5 // pred_check
        %p1580 = pneg %p1579
      $region82: #{tpu_custom_call.1} parent=5 // pred_check_branch
        %1582 = sbr.rel (%p1580) target = $region84
      $region83: #{tpu_custom_call.1} parent=5 // pred_region
        %s1583 = ssub.s32 %s23, 2
        // Predicated region
        $region85: #{tpu_custom_call.1} parent=83 // pred_check
          %p1584 = pneg %p356
        $region86: #{tpu_custom_call.1} parent=83 // pred_check_branch
          %1586 = sbr.rel (%p1584) target = $region88
        $region87: #{tpu_custom_call.1} parent=83 // pred_region
          %s1587 = sand.u32 %s341, 1
          %s1588 = scalar_lea.sflag [#allocation3], %s1587
          %s1589 = sand.u32 %s341, 1
          %s1590 = smul.addr %s1589, 16
          %s1591 = scalar_lea.vmem [#allocation2], %s1590
          %1592 = dma.done %s1588, 256
        $region88: #{tpu_custom_call.1} parent=83 // pred_fallthru
          _
      $region84: #{tpu_custom_call.1} parent=5 // pred_fallthru
        _
    $region6: #{tpu_custom_call.1} parent=1 // loop_footer
      %s27 = sadd.s32 1, %s23
    $region7: #{tpu_custom_call.1} parent=1 // loop_footer_branch
      %22 = sbr.rel target = $region3
    $region8: #{tpu_custom_call.1} parent=1 // loop_exit
      _
    %1593 = vsyncpa [#allocation3], 1
    %s1594 = scalar_lea.sflag [#allocation3], 1
    %1595 = vsyncpa %s1594, 1

</llo_original>
